<compile_context>
chip_gen: v6e
topology: v6e:2x2x1
jax: 0.10.0
libtpu: 0.0.40
codegen_flags: <defaults>
</compile_context>

<pallas_src>
import jax
import jax.numpy as jnp
from jax.experimental import pallas as pl
from jax.experimental.pallas import tpu as pltpu

# ---- "constants" module values --------------------------------------------
SEQUENCE_LENGTH = 8
ALTO_DIM = 22
TENOR_DIM = 22
BASS_DIM = 29
HIDDEN = 200

IN_FEATURES = SEQUENCE_LENGTH * 22            # 176
HIDDEN_PAD = 256                              # 200 -> 256 (2 * 128, lane-dense)
ALTO_FLAT = SEQUENCE_LENGTH * ALTO_DIM        # 176
TENOR_FLAT = SEQUENCE_LENGTH * TENOR_DIM      # 176
BASS_FLAT = SEQUENCE_LENGTH * BASS_DIM        # 232
HEADS_FLAT = ALTO_FLAT + TENOR_FLAT + BASS_FLAT   # 584
HEADS_PAD = 640                               # 5 * 128, lane-dense


# ------------------------- fused Pallas kernel ------------------------------
def _forward_kernel(x_ref, w_in_ref, b_in_ref, w_h_ref, b_h_ref,
                    w_heads_ref, b_heads_ref,
                    alto_ref, tenor_ref, bass_ref):
    x = x_ref[...]                                                # (1, 176) f32

    # input linear (no ReLU here, matching the module)
    h = jnp.dot(x, w_in_ref[...].astype(jnp.float32),
                preferred_element_type=jnp.float32) + b_in_ref[...]   # (1, 256)
    # hidden linear + ReLU
    h = jnp.dot(h, w_h_ref[...].astype(jnp.float32),
                preferred_element_type=jnp.float32) + b_h_ref[...]
    h = jnp.maximum(h, 0.0)                                       # (1, 256)

    # single fused head matmul: [alto(176) | tenor(176) | bass(232) | pad] = 640
    z = jnp.dot(h, w_heads_ref[...].astype(jnp.float32),
                preferred_element_type=jnp.float32) + b_heads_ref[...]
    z = jnp.maximum(z, 0.0)                                       # ReLU on logits (per spec)

    # fused log-softmax epilogue: static lane slice per timestep -> row store.
    def _head_log_softmax(out_ref, base, n_cls):
        for s in range(SEQUENCE_LENGTH):                          # static unroll (24 rows total)
            lo = base + s * n_cls
            row = z[:, lo:lo + n_cls]                             # (1, n_cls)
            m = jnp.max(row, axis=-1, keepdims=True)
            sh = row - m
            lse = jnp.log(jnp.sum(jnp.exp(sh), axis=-1, keepdims=True))
            out_ref[pl.ds(s, 1), :] = sh - lse

    _head_log_softmax(alto_ref, 0, ALTO_DIM)
    _head_log_softmax(tenor_ref, ALTO_FLAT, TENOR_DIM)
    _head_log_softmax(bass_ref, ALTO_FLAT + TENOR_FLAT, BASS_DIM)


# ------------------------- one-time parameter packing -----------------------
def pack_params(params, weights_dtype=jnp.bfloat16):
    """Transpose to (in, out), fuse+pad head weights, cast weights to bf16.

    Done ONCE outside the forward so the per-call forward is a single pallas_call.
    Zero-padded rows/cols contribute nothing to the math.
    """
    (w_in, b_in, w_h, b_h, w_a, b_a, w_t, b_t, w_b, b_b) = params

    w_in_p = jnp.zeros((IN_FEATURES, HIDDEN_PAD), jnp.float32).at[:, :HIDDEN].set(w_in.T)
    b_in_p = jnp.zeros((1, HIDDEN_PAD), jnp.float32).at[0, :HIDDEN].set(b_in)

    w_h_p = jnp.zeros((HIDDEN_PAD, HIDDEN_PAD), jnp.float32).at[:HIDDEN, :HIDDEN].set(w_h.T)
    b_h_p = jnp.zeros((1, HIDDEN_PAD), jnp.float32).at[0, :HIDDEN].set(b_h)

    w_cat = jnp.concatenate([w_a.T, w_t.T, w_b.T], axis=1)        # (200, 584)
    b_cat = jnp.concatenate([b_a, b_t, b_b])                      # (584,)
    w_hd_p = jnp.zeros((HIDDEN_PAD, HEADS_PAD), jnp.float32).at[:HIDDEN, :HEADS_FLAT].set(w_cat)
    b_hd_p = jnp.zeros((1, HEADS_PAD), jnp.float32).at[0, :HEADS_FLAT].set(b_cat)

    cast = lambda w: w.astype(weights_dtype)                      # biases stay f32
    return (cast(w_in_p), b_in_p, cast(w_h_p), b_h_p, cast(w_hd_p), b_hd_p)


# ------------------------- forward wrapper ----------------------------------
def forward_network(x, packed_params):
    """Pallas implementation of ForwardNetwork.forward.

    x: (1, SEQUENCE_LENGTH, 22) float32.
    packed_params: output of pack_params(...).
    Returns (y_alto, y_tenor, y_bass) with shapes (8,22), (8,22), (8,29).
    """
    assert x.shape[0] == 1, "module reshapes to (SEQ, C) -> batch must be 1"
    xf = x.reshape(1, IN_FEATURES).astype(jnp.float32)            # torch.flatten(x, 1)

    vmem = pl.BlockSpec(memory_space=pltpu.MemorySpace.VMEM)
    return pl.pallas_call(
        _forward_kernel,
        out_shape=(
            jax.ShapeDtypeStruct((SEQUENCE_LENGTH, ALTO_DIM), jnp.float32),
            jax.ShapeDtypeStruct((SEQUENCE_LENGTH, TENOR_DIM), jnp.float32),
            jax.ShapeDtypeStruct((SEQUENCE_LENGTH, BASS_DIM), jnp.float32),
        ),
        in_specs=[vmem] * 7,
        out_specs=(vmem, vmem, vmem),
    )(xf, *packed_params)


# ------------------------- deterministic parameter init ---------------------
def init_params(key):
    def linear(key, fan_in, fan_out):
        k_w, k_b = jax.random.split(key)
        bound = 1.0 / jnp.sqrt(fan_in)
        w = jax.random.uniform(k_w, (fan_out, fan_in), jnp.float32, -bound, bound)
        b = jax.random.uniform(k_b, (fan_out,), jnp.float32, -bound, bound)
        return w, b

    keys = jax.random.split(key, 5)
    w_in, b_in = linear(keys[0], IN_FEATURES, HIDDEN)
    w_h, b_h = linear(keys[1], HIDDEN, HIDDEN)
    w_a, b_a = linear(keys[2], HIDDEN, ALTO_FLAT)
    w_t, b_t = linear(keys[3], HIDDEN, TENOR_FLAT)
    w_b, b_b = linear(keys[4], HIDDEN, BASS_FLAT)
    return (w_in, b_in, w_h, b_h, w_a, b_a, w_t, b_t, w_b, b_b)


# ------------------------- pure-JAX references (validation) -----------------
def reference_from_packed(x, packed_params):
    """Same math as the kernel, using the exact (bf16-rounded) packed weights."""
    w_in, b_in, w_h, b_h, w_hd, b_hd = [jnp.asarray(p, jnp.float32) for p in packed_params]
    xf = x.reshape(1, IN_FEATURES)
    h = xf @ w_in + b_in
    h = jnp.maximum(h @ w_h + b_h, 0.0)
    z = jnp.maximum(h @ w_hd + b_hd, 0.0)

    def head(lo, c):
        zz = z[0, lo:lo + SEQUENCE_LENGTH * c].reshape(SEQUENCE_LENGTH, c)
        return jax.nn.log_softmax(zz, axis=1)

    return head(0, ALTO_DIM), head(ALTO_FLAT, TENOR_DIM), head(ALTO_FLAT + TENOR_FLAT, BASS_DIM)


def reference_original(x, params):
    """Reference using the original f32 (out, in) PyTorch-convention weights."""
    (w_in, b_in, w_h, b_h, w_a, b_a, w_t, b_t, w_b, b_b) = params
    xf = x.reshape(1, -1)
    h = xf @ w_in.T + b_in
    h = jnp.maximum(h @ w_h.T + b_h, 0.0)

    def head(w, b, c):
        z = jnp.maximum(h @ w.T + b, 0.0).reshape(SEQUENCE_LENGTH, c)
        return jax.nn.log_softmax(z, axis=1)

    return head(w_a, b_a, ALTO_DIM), head(w_t, b_t, TENOR_DIM), head(w_b, b_b, BASS_DIM)


if __name__ == "__main__":
    key = jax.random.PRNGKey(0)
    k_x, k_p = jax.random.split(key)
    x = jax.random.normal(k_x, (1, SEQUENCE_LENGTH, 22), jnp.float32)
    params = init_params(k_p)
    packed = pack_params(params)                     # one-time pre-pack (transpose/fuse/pad/bf16)

    fwd = jax.jit(forward_network)
    y_alto, y_tenor, y_bass = fwd(x, packed)
    jax.block_until_ready((y_alto, y_tenor, y_bass))

    # (1) strict check vs a reference using the identical packed (bf16-rounded) weights:
    #     validates the fused kernel math itself.
    for got, ref in zip((y_alto, y_tenor, y_bass), reference_from_packed(x, packed)):
        assert got.shape == ref.shape
        assert jnp.allclose(got, ref, atol=2e-3, rtol=2e-3), "mismatch vs packed-weight reference"

    # (2) fidelity check vs the original f32-weight module semantics; slack only
    #     accounts for bf16 rounding of the stored weights.
    for got, ref in zip((y_alto, y_tenor, y_bass), reference_original(x, params)):
        assert got.shape == ref.shape
        assert jnp.allclose(got, ref, atol=3e-2, rtol=3e-2), "mismatch vs original f32 reference"

    print("KERNEL_OK")
</pallas_src>

<mosaic_0001>
module attributes {stable_mosaic.version = 11 : i64} {
  func.func @_forward_kernel(%arg0: memref<1x176xf32, #tpu.memory_space<vmem>>, %arg1: memref<176x256xbf16, #tpu.memory_space<vmem>>, %arg2: memref<1x256xf32, #tpu.memory_space<vmem>>, %arg3: memref<256x256xbf16, #tpu.memory_space<vmem>>, %arg4: memref<1x256xf32, #tpu.memory_space<vmem>>, %arg5: memref<256x640xbf16, #tpu.memory_space<vmem>>, %arg6: memref<1x640xf32, #tpu.memory_space<vmem>>, %arg7: memref<8x22xf32, #tpu.memory_space<vmem>>, %arg8: memref<8x22xf32, #tpu.memory_space<vmem>>, %arg9: memref<8x29xf32, #tpu.memory_space<vmem>>) attributes {dimension_semantics = [], scalar_prefetch = 0 : i64, scratch_operands = 0 : i64, tpu.core_type = #tpu.core_type<tc>} {
    %c0 = arith.constant 0 : index
    %c0_0 = arith.constant 0 : index
    %0 = vector.load %arg0[%c0, %c0_0] : memref<1x176xf32, #tpu.memory_space<vmem>>, vector<1x176xf32>
    %c0_1 = arith.constant 0 : index
    %c0_2 = arith.constant 0 : index
    %1 = vector.load %arg1[%c0_1, %c0_2] : memref<176x256xbf16, #tpu.memory_space<vmem>>, vector<176x256xbf16>
    %2 = arith.extf %1 : vector<176x256xbf16> to vector<176x256xf32>
    %cst = arith.constant dense<0.000000e+00> : vector<1x256xf32>
    %3 = tpu.matmul %0, %2, %cst {dimension_numbers = #tpu.dot_dimension_numbers<[1], [0], [0], [1], [0, 0, 1, 1], [], []>} : vector<1x176xf32>, vector<176x256xf32>, vector<1x256xf32> -> vector<1x256xf32>
    %c0_3 = arith.constant 0 : index
    %c0_4 = arith.constant 0 : index
    %4 = vector.load %arg2[%c0_3, %c0_4] : memref<1x256xf32, #tpu.memory_space<vmem>>, vector<1x256xf32>
    %5 = arith.addf %3, %4 : vector<1x256xf32>
    %c0_5 = arith.constant 0 : index
    %c0_6 = arith.constant 0 : index
    %6 = vector.load %arg3[%c0_5, %c0_6] : memref<256x256xbf16, #tpu.memory_space<vmem>>, vector<256x256xbf16>
    %7 = arith.extf %6 : vector<256x256xbf16> to vector<256x256xf32>
    %cst_7 = arith.constant dense<0.000000e+00> : vector<1x256xf32>
    %8 = tpu.matmul %5, %7, %cst_7 {dimension_numbers = #tpu.dot_dimension_numbers<[1], [0], [0], [1], [0, 0, 1, 1], [], []>} : vector<1x256xf32>, vector<256x256xf32>, vector<1x256xf32> -> vector<1x256xf32>
    %c0_8 = arith.constant 0 : index
    %c0_9 = arith.constant 0 : index
    %9 = vector.load %arg4[%c0_8, %c0_9] : memref<1x256xf32, #tpu.memory_space<vmem>>, vector<1x256xf32>
    %10 = arith.addf %8, %9 : vector<1x256xf32>
    %cst_10 = arith.constant 0.000000e+00 : f32
    %11 = vector.broadcast %cst_10 : f32 to vector<1x256xf32>
    %12 = arith.maximumf %10, %11 : vector<1x256xf32>
    %c0_11 = arith.constant 0 : index
    %c0_12 = arith.constant 0 : index
    %13 = vector.load %arg5[%c0_11, %c0_12] : memref<256x640xbf16, #tpu.memory_space<vmem>>, vector<256x640xbf16>
    %14 = arith.extf %13 : vector<256x640xbf16> to vector<256x640xf32>
    %cst_13 = arith.constant dense<0.000000e+00> : vector<1x640xf32>
    %15 = tpu.matmul %12, %14, %cst_13 {dimension_numbers = #tpu.dot_dimension_numbers<[1], [0], [0], [1], [0, 0, 1, 1], [], []>} : vector<1x256xf32>, vector<256x640xf32>, vector<1x640xf32> -> vector<1x640xf32>
    %c0_14 = arith.constant 0 : index
    %c0_15 = arith.constant 0 : index
    %16 = vector.load %arg6[%c0_14, %c0_15] : memref<1x640xf32, #tpu.memory_space<vmem>>, vector<1x640xf32>
    %17 = arith.addf %15, %16 : vector<1x640xf32>
    %cst_16 = arith.constant 0.000000e+00 : f32
    %18 = vector.broadcast %cst_16 : f32 to vector<1x640xf32>
    %19 = arith.maximumf %17, %18 : vector<1x640xf32>
    %20 = vector.extract_strided_slice %19 {offsets = [0, 0], sizes = [1, 22], strides = [1, 1]} : vector<1x640xf32> to vector<1x22xf32>
    %cst_17 = arith.constant dense<0xFF800000> : vector<1xf32>
    %21 = vector.multi_reduction <maximumf>, %20, %cst_17 [1] : vector<1x22xf32> to vector<1xf32>
    %22 = vector.shape_cast %21 : vector<1xf32> to vector<1x1xf32>
    %23 = vector.broadcast %22 : vector<1x1xf32> to vector<1x22xf32>
    %24 = arith.subf %20, %23 : vector<1x22xf32>
    %25 = math.exp %24 : vector<1x22xf32>
    %cst_18 = arith.constant dense<0.000000e+00> : vector<1xf32>
    %26 = vector.multi_reduction <add>, %25, %cst_18 [1] : vector<1x22xf32> to vector<1xf32>
    %27 = vector.shape_cast %26 : vector<1xf32> to vector<1x1xf32>
    %28 = math.log %27 : vector<1x1xf32>
    %29 = vector.broadcast %28 : vector<1x1xf32> to vector<1x22xf32>
    %30 = arith.subf %24, %29 : vector<1x22xf32>
    %c0_19 = arith.constant 0 : index
    %c0_20 = arith.constant 0 : index
    %31 = vector.load %arg7[%c0_19, %c0_20] : memref<8x22xf32, #tpu.memory_space<vmem>>, vector<1x22xf32>
    tpu.vector_store %arg7[%c0_19, %c0_20], %30 {strides = array<i32>} : memref<8x22xf32, #tpu.memory_space<vmem>>, vector<1x22xf32>,
    %32 = vector.extract_strided_slice %19 {offsets = [0, 22], sizes = [1, 22], strides = [1, 1]} : vector<1x640xf32> to vector<1x22xf32>
    %cst_21 = arith.constant dense<0xFF800000> : vector<1xf32>
    %33 = vector.multi_reduction <maximumf>, %32, %cst_21 [1] : vector<1x22xf32> to vector<1xf32>
    %34 = vector.shape_cast %33 : vector<1xf32> to vector<1x1xf32>
    %35 = vector.broadcast %34 : vector<1x1xf32> to vector<1x22xf32>
    %36 = arith.subf %32, %35 : vector<1x22xf32>
    %37 = math.exp %36 : vector<1x22xf32>
    %cst_22 = arith.constant dense<0.000000e+00> : vector<1xf32>
    %38 = vector.multi_reduction <add>, %37, %cst_22 [1] : vector<1x22xf32> to vector<1xf32>
    %39 = vector.shape_cast %38 : vector<1xf32> to vector<1x1xf32>
    %40 = math.log %39 : vector<1x1xf32>
    %41 = vector.broadcast %40 : vector<1x1xf32> to vector<1x22xf32>
    %42 = arith.subf %36, %41 : vector<1x22xf32>
    %c1 = arith.constant 1 : index
    %c0_23 = arith.constant 0 : index
    %43 = vector.load %arg7[%c1, %c0_23] : memref<8x22xf32, #tpu.memory_space<vmem>>, vector<1x22xf32>
    tpu.vector_store %arg7[%c1, %c0_23], %42 {strides = array<i32>} : memref<8x22xf32, #tpu.memory_space<vmem>>, vector<1x22xf32>,
    %44 = vector.extract_strided_slice %19 {offsets = [0, 44], sizes = [1, 22], strides = [1, 1]} : vector<1x640xf32> to vector<1x22xf32>
    %cst_24 = arith.constant dense<0xFF800000> : vector<1xf32>
    %45 = vector.multi_reduction <maximumf>, %44, %cst_24 [1] : vector<1x22xf32> to vector<1xf32>
    %46 = vector.shape_cast %45 : vector<1xf32> to vector<1x1xf32>
    %47 = vector.broadcast %46 : vector<1x1xf32> to vector<1x22xf32>
    %48 = arith.subf %44, %47 : vector<1x22xf32>
    %49 = math.exp %48 : vector<1x22xf32>
    %cst_25 = arith.constant dense<0.000000e+00> : vector<1xf32>
    %50 = vector.multi_reduction <add>, %49, %cst_25 [1] : vector<1x22xf32> to vector<1xf32>
    %51 = vector.shape_cast %50 : vector<1xf32> to vector<1x1xf32>
    %52 = math.log %51 : vector<1x1xf32>
    %53 = vector.broadcast %52 : vector<1x1xf32> to vector<1x22xf32>
    %54 = arith.subf %48, %53 : vector<1x22xf32>
    %c2 = arith.constant 2 : index
    %c0_26 = arith.constant 0 : index
    %55 = vector.load %arg7[%c2, %c0_26] : memref<8x22xf32, #tpu.memory_space<vmem>>, vector<1x22xf32>
    tpu.vector_store %arg7[%c2, %c0_26], %54 {strides = array<i32>} : memref<8x22xf32, #tpu.memory_space<vmem>>, vector<1x22xf32>,
    %56 = vector.extract_strided_slice %19 {offsets = [0, 66], sizes = [1, 22], strides = [1, 1]} : vector<1x640xf32> to vector<1x22xf32>
    %cst_27 = arith.constant dense<0xFF800000> : vector<1xf32>
    %57 = vector.multi_reduction <maximumf>, %56, %cst_27 [1] : vector<1x22xf32> to vector<1xf32>
    %58 = vector.shape_cast %57 : vector<1xf32> to vector<1x1xf32>
    %59 = vector.broadcast %58 : vector<1x1xf32> to vector<1x22xf32>
    %60 = arith.subf %56, %59 : vector<1x22xf32>
    %61 = math.exp %60 : vector<1x22xf32>
    %cst_28 = arith.constant dense<0.000000e+00> : vector<1xf32>
    %62 = vector.multi_reduction <add>, %61, %cst_28 [1] : vector<1x22xf32> to vector<1xf32>
    %63 = vector.shape_cast %62 : vector<1xf32> to vector<1x1xf32>
    %64 = math.log %63 : vector<1x1xf32>
    %65 = vector.broadcast %64 : vector<1x1xf32> to vector<1x22xf32>
    %66 = arith.subf %60, %65 : vector<1x22xf32>
    %c3 = arith.constant 3 : index
    %c0_29 = arith.constant 0 : index
    %67 = vector.load %arg7[%c3, %c0_29] : memref<8x22xf32, #tpu.memory_space<vmem>>, vector<1x22xf32>
    tpu.vector_store %arg7[%c3, %c0_29], %66 {strides = array<i32>} : memref<8x22xf32, #tpu.memory_space<vmem>>, vector<1x22xf32>,
    %68 = vector.extract_strided_slice %19 {offsets = [0, 88], sizes = [1, 22], strides = [1, 1]} : vector<1x640xf32> to vector<1x22xf32>
    %cst_30 = arith.constant dense<0xFF800000> : vector<1xf32>
    %69 = vector.multi_reduction <maximumf>, %68, %cst_30 [1] : vector<1x22xf32> to vector<1xf32>
    %70 = vector.shape_cast %69 : vector<1xf32> to vector<1x1xf32>
    %71 = vector.broadcast %70 : vector<1x1xf32> to vector<1x22xf32>
    %72 = arith.subf %68, %71 : vector<1x22xf32>
    %73 = math.exp %72 : vector<1x22xf32>
    %cst_31 = arith.constant dense<0.000000e+00> : vector<1xf32>
    %74 = vector.multi_reduction <add>, %73, %cst_31 [1] : vector<1x22xf32> to vector<1xf32>
    %75 = vector.shape_cast %74 : vector<1xf32> to vector<1x1xf32>
    %76 = math.log %75 : vector<1x1xf32>
    %77 = vector.broadcast %76 : vector<1x1xf32> to vector<1x22xf32>
    %78 = arith.subf %72, %77 : vector<1x22xf32>
    %c4 = arith.constant 4 : index
    %c0_32 = arith.constant 0 : index
    %79 = vector.load %arg7[%c4, %c0_32] : memref<8x22xf32, #tpu.memory_space<vmem>>, vector<1x22xf32>
    tpu.vector_store %arg7[%c4, %c0_32], %78 {strides = array<i32>} : memref<8x22xf32, #tpu.memory_space<vmem>>, vector<1x22xf32>,
    %80 = vector.extract_strided_slice %19 {offsets = [0, 110], sizes = [1, 22], strides = [1, 1]} : vector<1x640xf32> to vector<1x22xf32>
    %cst_33 = arith.constant dense<0xFF800000> : vector<1xf32>
    %81 = vector.multi_reduction <maximumf>, %80, %cst_33 [1] : vector<1x22xf32> to vector<1xf32>
    %82 = vector.shape_cast %81 : vector<1xf32> to vector<1x1xf32>
    %83 = vector.broadcast %82 : vector<1x1xf32> to vector<1x22xf32>
    %84 = arith.subf %80, %83 : vector<1x22xf32>
    %85 = math.exp %84 : vector<1x22xf32>
    %cst_34 = arith.constant dense<0.000000e+00> : vector<1xf32>
    %86 = vector.multi_reduction <add>, %85, %cst_34 [1] : vector<1x22xf32> to vector<1xf32>
    %87 = vector.shape_cast %86 : vector<1xf32> to vector<1x1xf32>
    %88 = math.log %87 : vector<1x1xf32>
    %89 = vector.broadcast %88 : vector<1x1xf32> to vector<1x22xf32>
    %90 = arith.subf %84, %89 : vector<1x22xf32>
    %c5 = arith.constant 5 : index
    %c0_35 = arith.constant 0 : index
    %91 = vector.load %arg7[%c5, %c0_35] : memref<8x22xf32, #tpu.memory_space<vmem>>, vector<1x22xf32>
    tpu.vector_store %arg7[%c5, %c0_35], %90 {strides = array<i32>} : memref<8x22xf32, #tpu.memory_space<vmem>>, vector<1x22xf32>,
    %92 = vector.extract_strided_slice %19 {offsets = [0, 132], sizes = [1, 22], strides = [1, 1]} : vector<1x640xf32> to vector<1x22xf32>
    %cst_36 = arith.constant dense<0xFF800000> : vector<1xf32>
    %93 = vector.multi_reduction <maximumf>, %92, %cst_36 [1] : vector<1x22xf32> to vector<1xf32>
    %94 = vector.shape_cast %93 : vector<1xf32> to vector<1x1xf32>
    %95 = vector.broadcast %94 : vector<1x1xf32> to vector<1x22xf32>
    %96 = arith.subf %92, %95 : vector<1x22xf32>
    %97 = math.exp %96 : vector<1x22xf32>
    %cst_37 = arith.constant dense<0.000000e+00> : vector<1xf32>
    %98 = vector.multi_reduction <add>, %97, %cst_37 [1] : vector<1x22xf32> to vector<1xf32>
    %99 = vector.shape_cast %98 : vector<1xf32> to vector<1x1xf32>
    %100 = math.log %99 : vector<1x1xf32>
    %101 = vector.broadcast %100 : vector<1x1xf32> to vector<1x22xf32>
    %102 = arith.subf %96, %101 : vector<1x22xf32>
    %c6 = arith.constant 6 : index
    %c0_38 = arith.constant 0 : index
    %103 = vector.load %arg7[%c6, %c0_38] : memref<8x22xf32, #tpu.memory_space<vmem>>, vector<1x22xf32>
    tpu.vector_store %arg7[%c6, %c0_38], %102 {strides = array<i32>} : memref<8x22xf32, #tpu.memory_space<vmem>>, vector<1x22xf32>,
    %104 = vector.extract_strided_slice %19 {offsets = [0, 154], sizes = [1, 22], strides = [1, 1]} : vector<1x640xf32> to vector<1x22xf32>
    %cst_39 = arith.constant dense<0xFF800000> : vector<1xf32>
    %105 = vector.multi_reduction <maximumf>, %104, %cst_39 [1] : vector<1x22xf32> to vector<1xf32>
    %106 = vector.shape_cast %105 : vector<1xf32> to vector<1x1xf32>
    %107 = vector.broadcast %106 : vector<1x1xf32> to vector<1x22xf32>
    %108 = arith.subf %104, %107 : vector<1x22xf32>
    %109 = math.exp %108 : vector<1x22xf32>
    %cst_40 = arith.constant dense<0.000000e+00> : vector<1xf32>
    %110 = vector.multi_reduction <add>, %109, %cst_40 [1] : vector<1x22xf32> to vector<1xf32>
    %111 = vector.shape_cast %110 : vector<1xf32> to vector<1x1xf32>
    %112 = math.log %111 : vector<1x1xf32>
    %113 = vector.broadcast %112 : vector<1x1xf32> to vector<1x22xf32>
    %114 = arith.subf %108, %113 : vector<1x22xf32>
    %c7 = arith.constant 7 : index
    %c0_41 = arith.constant 0 : index
    %115 = vector.load %arg7[%c7, %c0_41] : memref<8x22xf32, #tpu.memory_space<vmem>>, vector<1x22xf32>
    tpu.vector_store %arg7[%c7, %c0_41], %114 {strides = array<i32>} : memref<8x22xf32, #tpu.memory_space<vmem>>, vector<1x22xf32>,
    %116 = vector.extract_strided_slice %19 {offsets = [0, 176], sizes = [1, 22], strides = [1, 1]} : vector<1x640xf32> to vector<1x22xf32>
    %cst_42 = arith.constant dense<0xFF800000> : vector<1xf32>
    %117 = vector.multi_reduction <maximumf>, %116, %cst_42 [1] : vector<1x22xf32> to vector<1xf32>
    %118 = vector.shape_cast %117 : vector<1xf32> to vector<1x1xf32>
    %119 = vector.broadcast %118 : vector<1x1xf32> to vector<1x22xf32>
    %120 = arith.subf %116, %119 : vector<1x22xf32>
    %121 = math.exp %120 : vector<1x22xf32>
    %cst_43 = arith.constant dense<0.000000e+00> : vector<1xf32>
    %122 = vector.multi_reduction <add>, %121, %cst_43 [1] : vector<1x22xf32> to vector<1xf32>
    %123 = vector.shape_cast %122 : vector<1xf32> to vector<1x1xf32>
    %124 = math.log %123 : vector<1x1xf32>
    %125 = vector.broadcast %124 : vector<1x1xf32> to vector<1x22xf32>
    %126 = arith.subf %120, %125 : vector<1x22xf32>
    %c0_44 = arith.constant 0 : index
    %c0_45 = arith.constant 0 : index
    %127 = vector.load %arg8[%c0_44, %c0_45] : memref<8x22xf32, #tpu.memory_space<vmem>>, vector<1x22xf32>
    tpu.vector_store %arg8[%c0_44, %c0_45], %126 {strides = array<i32>} : memref<8x22xf32, #tpu.memory_space<vmem>>, vector<1x22xf32>,
    %128 = vector.extract_strided_slice %19 {offsets = [0, 198], sizes = [1, 22], strides = [1, 1]} : vector<1x640xf32> to vector<1x22xf32>
    %cst_46 = arith.constant dense<0xFF800000> : vector<1xf32>
    %129 = vector.multi_reduction <maximumf>, %128, %cst_46 [1] : vector<1x22xf32> to vector<1xf32>
    %130 = vector.shape_cast %129 : vector<1xf32> to vector<1x1xf32>
    %131 = vector.broadcast %130 : vector<1x1xf32> to vector<1x22xf32>
    %132 = arith.subf %128, %131 : vector<1x22xf32>
    %133 = math.exp %132 : vector<1x22xf32>
    %cst_47 = arith.constant dense<0.000000e+00> : vector<1xf32>
    %134 = vector.multi_reduction <add>, %133, %cst_47 [1] : vector<1x22xf32> to vector<1xf32>
    %135 = vector.shape_cast %134 : vector<1xf32> to vector<1x1xf32>
    %136 = math.log %135 : vector<1x1xf32>
    %137 = vector.broadcast %136 : vector<1x1xf32> to vector<1x22xf32>
    %138 = arith.subf %132, %137 : vector<1x22xf32>
    %c1_48 = arith.constant 1 : index
    %c0_49 = arith.constant 0 : index
    %139 = vector.load %arg8[%c1_48, %c0_49] : memref<8x22xf32, #tpu.memory_space<vmem>>, vector<1x22xf32>
    tpu.vector_store %arg8[%c1_48, %c0_49], %138 {strides = array<i32>} : memref<8x22xf32, #tpu.memory_space<vmem>>, vector<1x22xf32>,
    %140 = vector.extract_strided_slice %19 {offsets = [0, 220], sizes = [1, 22], strides = [1, 1]} : vector<1x640xf32> to vector<1x22xf32>
    %cst_50 = arith.constant dense<0xFF800000> : vector<1xf32>
    %141 = vector.multi_reduction <maximumf>, %140, %cst_50 [1] : vector<1x22xf32> to vector<1xf32>
    %142 = vector.shape_cast %141 : vector<1xf32> to vector<1x1xf32>
    %143 = vector.broadcast %142 : vector<1x1xf32> to vector<1x22xf32>
    %144 = arith.subf %140, %143 : vector<1x22xf32>
    %145 = math.exp %144 : vector<1x22xf32>
    %cst_51 = arith.constant dense<0.000000e+00> : vector<1xf32>
    %146 = vector.multi_reduction <add>, %145, %cst_51 [1] : vector<1x22xf32> to vector<1xf32>
    %147 = vector.shape_cast %146 : vector<1xf32> to vector<1x1xf32>
    %148 = math.log %147 : vector<1x1xf32>
    %149 = vector.broadcast %148 : vector<1x1xf32> to vector<1x22xf32>
    %150 = arith.subf %144, %149 : vector<1x22xf32>
    %c2_52 = arith.constant 2 : index
    %c0_53 = arith.constant 0 : index
    %151 = vector.load %arg8[%c2_52, %c0_53] : memref<8x22xf32, #tpu.memory_space<vmem>>, vector<1x22xf32>
    tpu.vector_store %arg8[%c2_52, %c0_53], %150 {strides = array<i32>} : memref<8x22xf32, #tpu.memory_space<vmem>>, vector<1x22xf32>,
    %152 = vector.extract_strided_slice %19 {offsets = [0, 242], sizes = [1, 22], strides = [1, 1]} : vector<1x640xf32> to vector<1x22xf32>
    %cst_54 = arith.constant dense<0xFF800000> : vector<1xf32>
    %153 = vector.multi_reduction <maximumf>, %152, %cst_54 [1] : vector<1x22xf32> to vector<1xf32>
    %154 = vector.shape_cast %153 : vector<1xf32> to vector<1x1xf32>
    %155 = vector.broadcast %154 : vector<1x1xf32> to vector<1x22xf32>
    %156 = arith.subf %152, %155 : vector<1x22xf32>
    %157 = math.exp %156 : vector<1x22xf32>
    %cst_55 = arith.constant dense<0.000000e+00> : vector<1xf32>
    %158 = vector.multi_reduction <add>, %157, %cst_55 [1] : vector<1x22xf32> to vector<1xf32>
    %159 = vector.shape_cast %158 : vector<1xf32> to vector<1x1xf32>
    %160 = math.log %159 : vector<1x1xf32>
    %161 = vector.broadcast %160 : vector<1x1xf32> to vector<1x22xf32>
    %162 = arith.subf %156, %161 : vector<1x22xf32>
    %c3_56 = arith.constant 3 : index
    %c0_57 = arith.constant 0 : index
    %163 = vector.load %arg8[%c3_56, %c0_57] : memref<8x22xf32, #tpu.memory_space<vmem>>, vector<1x22xf32>
    tpu.vector_store %arg8[%c3_56, %c0_57], %162 {strides = array<i32>} : memref<8x22xf32, #tpu.memory_space<vmem>>, vector<1x22xf32>,
    %164 = vector.extract_strided_slice %19 {offsets = [0, 264], sizes = [1, 22], strides = [1, 1]} : vector<1x640xf32> to vector<1x22xf32>
    %cst_58 = arith.constant dense<0xFF800000> : vector<1xf32>
    %165 = vector.multi_reduction <maximumf>, %164, %cst_58 [1] : vector<1x22xf32> to vector<1xf32>
    %166 = vector.shape_cast %165 : vector<1xf32> to vector<1x1xf32>
    %167 = vector.broadcast %166 : vector<1x1xf32> to vector<1x22xf32>
    %168 = arith.subf %164, %167 : vector<1x22xf32>
    %169 = math.exp %168 : vector<1x22xf32>
    %cst_59 = arith.constant dense<0.000000e+00> : vector<1xf32>
    %170 = vector.multi_reduction <add>, %169, %cst_59 [1] : vector<1x22xf32> to vector<1xf32>
    %171 = vector.shape_cast %170 : vector<1xf32> to vector<1x1xf32>
    %172 = math.log %171 : vector<1x1xf32>
    %173 = vector.broadcast %172 : vector<1x1xf32> to vector<1x22xf32>
    %174 = arith.subf %168, %173 : vector<1x22xf32>
    %c4_60 = arith.constant 4 : index
    %c0_61 = arith.constant 0 : index
    %175 = vector.load %arg8[%c4_60, %c0_61] : memref<8x22xf32, #tpu.memory_space<vmem>>, vector<1x22xf32>
    tpu.vector_store %arg8[%c4_60, %c0_61], %174 {strides = array<i32>} : memref<8x22xf32, #tpu.memory_space<vmem>>, vector<1x22xf32>,
    %176 = vector.extract_strided_slice %19 {offsets = [0, 286], sizes = [1, 22], strides = [1, 1]} : vector<1x640xf32> to vector<1x22xf32>
    %cst_62 = arith.constant dense<0xFF800000> : vector<1xf32>
    %177 = vector.multi_reduction <maximumf>, %176, %cst_62 [1] : vector<1x22xf32> to vector<1xf32>
    %178 = vector.shape_cast %177 : vector<1xf32> to vector<1x1xf32>
    %179 = vector.broadcast %178 : vector<1x1xf32> to vector<1x22xf32>
    %180 = arith.subf %176, %179 : vector<1x22xf32>
    %181 = math.exp %180 : vector<1x22xf32>
    %cst_63 = arith.constant dense<0.000000e+00> : vector<1xf32>
    %182 = vector.multi_reduction <add>, %181, %cst_63 [1] : vector<1x22xf32> to vector<1xf32>
    %183 = vector.shape_cast %182 : vector<1xf32> to vector<1x1xf32>
    %184 = math.log %183 : vector<1x1xf32>
    %185 = vector.broadcast %184 : vector<1x1xf32> to vector<1x22xf32>
    %186 = arith.subf %180, %185 : vector<1x22xf32>
    %c5_64 = arith.constant 5 : index
    %c0_65 = arith.constant 0 : index
    %187 = vector.load %arg8[%c5_64, %c0_65] : memref<8x22xf32, #tpu.memory_space<vmem>>, vector<1x22xf32>
    tpu.vector_store %arg8[%c5_64, %c0_65], %186 {strides = array<i32>} : memref<8x22xf32, #tpu.memory_space<vmem>>, vector<1x22xf32>,
    %188 = vector.extract_strided_slice %19 {offsets = [0, 308], sizes = [1, 22], strides = [1, 1]} : vector<1x640xf32> to vector<1x22xf32>
    %cst_66 = arith.constant dense<0xFF800000> : vector<1xf32>
    %189 = vector.multi_reduction <maximumf>, %188, %cst_66 [1] : vector<1x22xf32> to vector<1xf32>
    %190 = vector.shape_cast %189 : vector<1xf32> to vector<1x1xf32>
    %191 = vector.broadcast %190 : vector<1x1xf32> to vector<1x22xf32>
    %192 = arith.subf %188, %191 : vector<1x22xf32>
    %193 = math.exp %192 : vector<1x22xf32>
    %cst_67 = arith.constant dense<0.000000e+00> : vector<1xf32>
    %194 = vector.multi_reduction <add>, %193, %cst_67 [1] : vector<1x22xf32> to vector<1xf32>
    %195 = vector.shape_cast %194 : vector<1xf32> to vector<1x1xf32>
    %196 = math.log %195 : vector<1x1xf32>
    %197 = vector.broadcast %196 : vector<1x1xf32> to vector<1x22xf32>
    %198 = arith.subf %192, %197 : vector<1x22xf32>
    %c6_68 = arith.constant 6 : index
    %c0_69 = arith.constant 0 : index
    %199 = vector.load %arg8[%c6_68, %c0_69] : memref<8x22xf32, #tpu.memory_space<vmem>>, vector<1x22xf32>
    tpu.vector_store %arg8[%c6_68, %c0_69], %198 {strides = array<i32>} : memref<8x22xf32, #tpu.memory_space<vmem>>, vector<1x22xf32>,
    %200 = vector.extract_strided_slice %19 {offsets = [0, 330], sizes = [1, 22], strides = [1, 1]} : vector<1x640xf32> to vector<1x22xf32>
    %cst_70 = arith.constant dense<0xFF800000> : vector<1xf32>
    %201 = vector.multi_reduction <maximumf>, %200, %cst_70 [1] : vector<1x22xf32> to vector<1xf32>
    %202 = vector.shape_cast %201 : vector<1xf32> to vector<1x1xf32>
    %203 = vector.broadcast %202 : vector<1x1xf32> to vector<1x22xf32>
    %204 = arith.subf %200, %203 : vector<1x22xf32>
    %205 = math.exp %204 : vector<1x22xf32>
    %cst_71 = arith.constant dense<0.000000e+00> : vector<1xf32>
    %206 = vector.multi_reduction <add>, %205, %cst_71 [1] : vector<1x22xf32> to vector<1xf32>
    %207 = vector.shape_cast %206 : vector<1xf32> to vector<1x1xf32>
    %208 = math.log %207 : vector<1x1xf32>
    %209 = vector.broadcast %208 : vector<1x1xf32> to vector<1x22xf32>
    %210 = arith.subf %204, %209 : vector<1x22xf32>
    %c7_72 = arith.constant 7 : index
    %c0_73 = arith.constant 0 : index
    %211 = vector.load %arg8[%c7_72, %c0_73] : memref<8x22xf32, #tpu.memory_space<vmem>>, vector<1x22xf32>
    tpu.vector_store %arg8[%c7_72, %c0_73], %210 {strides = array<i32>} : memref<8x22xf32, #tpu.memory_space<vmem>>, vector<1x22xf32>,
    %212 = vector.extract_strided_slice %19 {offsets = [0, 352], sizes = [1, 29], strides = [1, 1]} : vector<1x640xf32> to vector<1x29xf32>
    %cst_74 = arith.constant dense<0xFF800000> : vector<1xf32>
    %213 = vector.multi_reduction <maximumf>, %212, %cst_74 [1] : vector<1x29xf32> to vector<1xf32>
    %214 = vector.shape_cast %213 : vector<1xf32> to vector<1x1xf32>
    %215 = vector.broadcast %214 : vector<1x1xf32> to vector<1x29xf32>
    %216 = arith.subf %212, %215 : vector<1x29xf32>
    %217 = math.exp %216 : vector<1x29xf32>
    %cst_75 = arith.constant dense<0.000000e+00> : vector<1xf32>
    %218 = vector.multi_reduction <add>, %217, %cst_75 [1] : vector<1x29xf32> to vector<1xf32>
    %219 = vector.shape_cast %218 : vector<1xf32> to vector<1x1xf32>
    %220 = math.log %219 : vector<1x1xf32>
    %221 = vector.broadcast %220 : vector<1x1xf32> to vector<1x29xf32>
    %222 = arith.subf %216, %221 : vector<1x29xf32>
    %c0_76 = arith.constant 0 : index
    %c0_77 = arith.constant 0 : index
    %223 = vector.load %arg9[%c0_76, %c0_77] : memref<8x29xf32, #tpu.memory_space<vmem>>, vector<1x29xf32>
    tpu.vector_store %arg9[%c0_76, %c0_77], %222 {strides = array<i32>} : memref<8x29xf32, #tpu.memory_space<vmem>>, vector<1x29xf32>,
    %224 = vector.extract_strided_slice %19 {offsets = [0, 381], sizes = [1, 29], strides = [1, 1]} : vector<1x640xf32> to vector<1x29xf32>
    %cst_78 = arith.constant dense<0xFF800000> : vector<1xf32>
    %225 = vector.multi_reduction <maximumf>, %224, %cst_78 [1] : vector<1x29xf32> to vector<1xf32>
    %226 = vector.shape_cast %225 : vector<1xf32> to vector<1x1xf32>
    %227 = vector.broadcast %226 : vector<1x1xf32> to vector<1x29xf32>
    %228 = arith.subf %224, %227 : vector<1x29xf32>
    %229 = math.exp %228 : vector<1x29xf32>
    %cst_79 = arith.constant dense<0.000000e+00> : vector<1xf32>
    %230 = vector.multi_reduction <add>, %229, %cst_79 [1] : vector<1x29xf32> to vector<1xf32>
    %231 = vector.shape_cast %230 : vector<1xf32> to vector<1x1xf32>
    %232 = math.log %231 : vector<1x1xf32>
    %233 = vector.broadcast %232 : vector<1x1xf32> to vector<1x29xf32>
    %234 = arith.subf %228, %233 : vector<1x29xf32>
    %c1_80 = arith.constant 1 : index
    %c0_81 = arith.constant 0 : index
    %235 = vector.load %arg9[%c1_80, %c0_81] : memref<8x29xf32, #tpu.memory_space<vmem>>, vector<1x29xf32>
    tpu.vector_store %arg9[%c1_80, %c0_81], %234 {strides = array<i32>} : memref<8x29xf32, #tpu.memory_space<vmem>>, vector<1x29xf32>,
    %236 = vector.extract_strided_slice %19 {offsets = [0, 410], sizes = [1, 29], strides = [1, 1]} : vector<1x640xf32> to vector<1x29xf32>
    %cst_82 = arith.constant dense<0xFF800000> : vector<1xf32>
    %237 = vector.multi_reduction <maximumf>, %236, %cst_82 [1] : vector<1x29xf32> to vector<1xf32>
    %238 = vector.shape_cast %237 : vector<1xf32> to vector<1x1xf32>
    %239 = vector.broadcast %238 : vector<1x1xf32> to vector<1x29xf32>
    %240 = arith.subf %236, %239 : vector<1x29xf32>
    %241 = math.exp %240 : vector<1x29xf32>
    %cst_83 = arith.constant dense<0.000000e+00> : vector<1xf32>
    %242 = vector.multi_reduction <add>, %241, %cst_83 [1] : vector<1x29xf32> to vector<1xf32>
    %243 = vector.shape_cast %242 : vector<1xf32> to vector<1x1xf32>
    %244 = math.log %243 : vector<1x1xf32>
    %245 = vector.broadcast %244 : vector<1x1xf32> to vector<1x29xf32>
    %246 = arith.subf %240, %245 : vector<1x29xf32>
    %c2_84 = arith.constant 2 : index
    %c0_85 = arith.constant 0 : index
    %247 = vector.load %arg9[%c2_84, %c0_85] : memref<8x29xf32, #tpu.memory_space<vmem>>, vector<1x29xf32>
    tpu.vector_store %arg9[%c2_84, %c0_85], %246 {strides = array<i32>} : memref<8x29xf32, #tpu.memory_space<vmem>>, vector<1x29xf32>,
    %248 = vector.extract_strided_slice %19 {offsets = [0, 439], sizes = [1, 29], strides = [1, 1]} : vector<1x640xf32> to vector<1x29xf32>
    %cst_86 = arith.constant dense<0xFF800000> : vector<1xf32>
    %249 = vector.multi_reduction <maximumf>, %248, %cst_86 [1] : vector<1x29xf32> to vector<1xf32>
    %250 = vector.shape_cast %249 : vector<1xf32> to vector<1x1xf32>
    %251 = vector.broadcast %250 : vector<1x1xf32> to vector<1x29xf32>
    %252 = arith.subf %248, %251 : vector<1x29xf32>
    %253 = math.exp %252 : vector<1x29xf32>
    %cst_87 = arith.constant dense<0.000000e+00> : vector<1xf32>
    %254 = vector.multi_reduction <add>, %253, %cst_87 [1] : vector<1x29xf32> to vector<1xf32>
    %255 = vector.shape_cast %254 : vector<1xf32> to vector<1x1xf32>
    %256 = math.log %255 : vector<1x1xf32>
    %257 = vector.broadcast %256 : vector<1x1xf32> to vector<1x29xf32>
    %258 = arith.subf %252, %257 : vector<1x29xf32>
    %c3_88 = arith.constant 3 : index
    %c0_89 = arith.constant 0 : index
    %259 = vector.load %arg9[%c3_88, %c0_89] : memref<8x29xf32, #tpu.memory_space<vmem>>, vector<1x29xf32>
    tpu.vector_store %arg9[%c3_88, %c0_89], %258 {strides = array<i32>} : memref<8x29xf32, #tpu.memory_space<vmem>>, vector<1x29xf32>,
    %260 = vector.extract_strided_slice %19 {offsets = [0, 468], sizes = [1, 29], strides = [1, 1]} : vector<1x640xf32> to vector<1x29xf32>
    %cst_90 = arith.constant dense<0xFF800000> : vector<1xf32>
    %261 = vector.multi_reduction <maximumf>, %260, %cst_90 [1] : vector<1x29xf32> to vector<1xf32>
    %262 = vector.shape_cast %261 : vector<1xf32> to vector<1x1xf32>
    %263 = vector.broadcast %262 : vector<1x1xf32> to vector<1x29xf32>
    %264 = arith.subf %260, %263 : vector<1x29xf32>
    %265 = math.exp %264 : vector<1x29xf32>
    %cst_91 = arith.constant dense<0.000000e+00> : vector<1xf32>
    %266 = vector.multi_reduction <add>, %265, %cst_91 [1] : vector<1x29xf32> to vector<1xf32>
    %267 = vector.shape_cast %266 : vector<1xf32> to vector<1x1xf32>
    %268 = math.log %267 : vector<1x1xf32>
    %269 = vector.broadcast %268 : vector<1x1xf32> to vector<1x29xf32>
    %270 = arith.subf %264, %269 : vector<1x29xf32>
    %c4_92 = arith.constant 4 : index
    %c0_93 = arith.constant 0 : index
    %271 = vector.load %arg9[%c4_92, %c0_93] : memref<8x29xf32, #tpu.memory_space<vmem>>, vector<1x29xf32>
    tpu.vector_store %arg9[%c4_92, %c0_93], %270 {strides = array<i32>} : memref<8x29xf32, #tpu.memory_space<vmem>>, vector<1x29xf32>,
    %272 = vector.extract_strided_slice %19 {offsets = [0, 497], sizes = [1, 29], strides = [1, 1]} : vector<1x640xf32> to vector<1x29xf32>
    %cst_94 = arith.constant dense<0xFF800000> : vector<1xf32>
    %273 = vector.multi_reduction <maximumf>, %272, %cst_94 [1] : vector<1x29xf32> to vector<1xf32>
    %274 = vector.shape_cast %273 : vector<1xf32> to vector<1x1xf32>
    %275 = vector.broadcast %274 : vector<1x1xf32> to vector<1x29xf32>
    %276 = arith.subf %272, %275 : vector<1x29xf32>
    %277 = math.exp %276 : vector<1x29xf32>
    %cst_95 = arith.constant dense<0.000000e+00> : vector<1xf32>
    %278 = vector.multi_reduction <add>, %277, %cst_95 [1] : vector<1x29xf32> to vector<1xf32>
    %279 = vector.shape_cast %278 : vector<1xf32> to vector<1x1xf32>
    %280 = math.log %279 : vector<1x1xf32>
    %281 = vector.broadcast %280 : vector<1x1xf32> to vector<1x29xf32>
    %282 = arith.subf %276, %281 : vector<1x29xf32>
    %c5_96 = arith.constant 5 : index
    %c0_97 = arith.constant 0 : index
    %283 = vector.load %arg9[%c5_96, %c0_97] : memref<8x29xf32, #tpu.memory_space<vmem>>, vector<1x29xf32>
    tpu.vector_store %arg9[%c5_96, %c0_97], %282 {strides = array<i32>} : memref<8x29xf32, #tpu.memory_space<vmem>>, vector<1x29xf32>,
    %284 = vector.extract_strided_slice %19 {offsets = [0, 526], sizes = [1, 29], strides = [1, 1]} : vector<1x640xf32> to vector<1x29xf32>
    %cst_98 = arith.constant dense<0xFF800000> : vector<1xf32>
    %285 = vector.multi_reduction <maximumf>, %284, %cst_98 [1] : vector<1x29xf32> to vector<1xf32>
    %286 = vector.shape_cast %285 : vector<1xf32> to vector<1x1xf32>
    %287 = vector.broadcast %286 : vector<1x1xf32> to vector<1x29xf32>
    %288 = arith.subf %284, %287 : vector<1x29xf32>
    %289 = math.exp %288 : vector<1x29xf32>
    %cst_99 = arith.constant dense<0.000000e+00> : vector<1xf32>
    %290 = vector.multi_reduction <add>, %289, %cst_99 [1] : vector<1x29xf32> to vector<1xf32>
    %291 = vector.shape_cast %290 : vector<1xf32> to vector<1x1xf32>
    %292 = math.log %291 : vector<1x1xf32>
    %293 = vector.broadcast %292 : vector<1x1xf32> to vector<1x29xf32>
    %294 = arith.subf %288, %293 : vector<1x29xf32>
    %c6_100 = arith.constant 6 : index
    %c0_101 = arith.constant 0 : index
    %295 = vector.load %arg9[%c6_100, %c0_101] : memref<8x29xf32, #tpu.memory_space<vmem>>, vector<1x29xf32>
    tpu.vector_store %arg9[%c6_100, %c0_101], %294 {strides = array<i32>} : memref<8x29xf32, #tpu.memory_space<vmem>>, vector<1x29xf32>,
    %296 = vector.extract_strided_slice %19 {offsets = [0, 555], sizes = [1, 29], strides = [1, 1]} : vector<1x640xf32> to vector<1x29xf32>
    %cst_102 = arith.constant dense<0xFF800000> : vector<1xf32>
    %297 = vector.multi_reduction <maximumf>, %296, %cst_102 [1] : vector<1x29xf32> to vector<1xf32>
    %298 = vector.shape_cast %297 : vector<1xf32> to vector<1x1xf32>
    %299 = vector.broadcast %298 : vector<1x1xf32> to vector<1x29xf32>
    %300 = arith.subf %296, %299 : vector<1x29xf32>
    %301 = math.exp %300 : vector<1x29xf32>
    %cst_103 = arith.constant dense<0.000000e+00> : vector<1xf32>
    %302 = vector.multi_reduction <add>, %301, %cst_103 [1] : vector<1x29xf32> to vector<1xf32>
    %303 = vector.shape_cast %302 : vector<1xf32> to vector<1x1xf32>
    %304 = math.log %303 : vector<1x1xf32>
    %305 = vector.broadcast %304 : vector<1x1xf32> to vector<1x29xf32>
    %306 = arith.subf %300, %305 : vector<1x29xf32>
    %c7_104 = arith.constant 7 : index
    %c0_105 = arith.constant 0 : index
    %307 = vector.load %arg9[%c7_104, %c0_105] : memref<8x29xf32, #tpu.memory_space<vmem>>, vector<1x29xf32>
    tpu.vector_store %arg9[%c7_104, %c0_105], %306 {strides = array<i32>} : memref<8x29xf32, #tpu.memory_space<vmem>>, vector<1x29xf32>,
    return
  }
}

</mosaic_0001>

<llo_original>
// kernel: forward_network.1
$region0: #{forward_network.1}
  #allocation0 [shape = 'u32[]', space=smem, size = 0x4, offset = 0x4, fixed_abs, tag = 'smem constant byte address 0x4 - core index']
  #allocation1 [shape = 'u32[144,128]{1,0:T(1,128)}', space=vmem, size = 0x12000, scoped, tag = 'internal scratch']
  %s0 = inlined_call_operand.vmem [shape: f32[1,176], index: 0, kind: input, shape index: {}]
  %s1 = inlined_call_operand.hbm [shape: bf16[176,256], index: 1, kind: input, shape index: {}]
  %s2 = inlined_call_operand.vmem [shape: f32[1,256], index: 2, kind: input, shape index: {}]
  %s3 = inlined_call_operand.hbm [shape: bf16[256,256], index: 3, kind: input, shape index: {}]
  %s4 = inlined_call_operand.vmem [shape: f32[1,256], index: 4, kind: input, shape index: {}]
  %s5 = inlined_call_operand.hbm [shape: bf16[256,640], index: 5, kind: input, shape index: {}]
  %s6 = inlined_call_operand.vmem [shape: f32[1,640], index: 6, kind: input, shape index: {}]
  %s7 = inlined_call_operand.hbm [shape: f32[8,22], index: 7, kind: output, shape index: {0}]
  %s8 = inlined_call_operand.hbm [shape: f32[8,22], index: 8, kind: output, shape index: {1}]
  %s9 = inlined_call_operand.hbm [shape: f32[8,29], index: 9, kind: output, shape index: {2}]
  %10 = xla_tuple %s7, %s8, %s9
  %s11 = sld [smem:[#allocation0]]
  $region66: #{forward_network.1} parent=0
    _
  %s13 = ssub.s32 1, %s11
  %s14 = scalar_select 0, %s13, %s11
  $region1: #{forward_network.1} parent=0
    #allocation2 [shape = 'u8[90112]{0}', space=vmem, size = 0x16000, scoped, tag = 'input window, operand 1, single buffered']
    #allocation3 [shape = 's32[1]{0}', space=sflag, size = 0x4, scoped, tag = 'scoped memory for forward_network.1']
    #allocation4 [shape = 's32[1]{0}', space=sflag, size = 0x4, scoped, tag = 'scoped memory for forward_network.1']
    #allocation5 [shape = 'u8[131072]{0}', space=vmem, size = 0x20000, scoped, tag = 'input window, operand 3, single buffered']
    #allocation6 [shape = 's32[1]{0}', space=sflag, size = 0x4, scoped, tag = 'scoped memory for forward_network.1']
    #allocation7 [shape = 'u8[327680]{0}', space=vmem, size = 0x50000, scoped, tag = 'input window, operand 5, single buffered']
    #allocation8 [shape = 'u8[4096]{0}', space=vmem, size = 0x1000, scoped, tag = 'output window, operand 0, single buffered']
    #allocation9 [shape = 'u8[4096]{0}', space=vmem, size = 0x1000, scoped, tag = 'output window, operand 1, single buffered']
    #allocation10 [shape = 's32[1]{0}', space=sflag, size = 0x4, scoped, tag = 'scoped memory for forward_network.1']
    #allocation11 [shape = 'u8[4096]{0}', space=vmem, size = 0x1000, scoped, tag = 'output window, operand 2, single buffered']
    %15 = vsyncpa [#allocation3], 0
    %16 = vsyncpa [#allocation6], 0
    %17 = vsyncpa [#allocation4], 0
    %18 = vsyncpa [#allocation10], 0
    // Predicated region
    $region2: #{forward_network.1} parent=1 // pred_check
      _
    $region3: #{forward_network.1} parent=1 // pred_check_branch
      %20 = sbr.rel (0) target = $region5
    $region4: #{forward_network.1} parent=1 // pred_region
      _
    $region5: #{forward_network.1} parent=1 // pred_fallthru
      _
    // Predicated region
    $region6: #{forward_network.1} parent=1 // pred_check
      _
    $region7: #{forward_network.1} parent=1 // pred_check_branch
      %22 = sbr.rel (0) target = $region9
    $region8: #{forward_network.1} parent=1 // pred_region
      %s24 = ssub.s32 2816, 2816
      %25 = vsyncadd [#allocation3], %s24
      %s26 = sshll.u32 [#allocation2], 4
      %s27 = int_to_ptr.vmem [resolvable:$true] %s26
      %32 = dma.hbm_to_vmem [thread:$0]  %s1, 2816, %s27, [#allocation3], 128, 128, 8
    $region9: #{forward_network.1} parent=1 // pred_fallthru
      _
    // Predicated region
    $region10: #{forward_network.1} parent=1 // pred_check
      _
    $region11: #{forward_network.1} parent=1 // pred_check_branch
      %34 = sbr.rel (0) target = $region13
    $region12: #{forward_network.1} parent=1 // pred_region
      _
    $region13: #{forward_network.1} parent=1 // pred_fallthru
      _
    // Predicated region
    $region14: #{forward_network.1} parent=1 // pred_check
      _
    $region15: #{forward_network.1} parent=1 // pred_check_branch
      %36 = sbr.rel (0) target = $region17
    $region16: #{forward_network.1} parent=1 // pred_region
      %s38 = ssub.s32 4096, 4096
      %39 = vsyncadd [#allocation6], %s38
      %s40 = sshll.u32 [#allocation5], 4
      %s41 = int_to_ptr.vmem [resolvable:$true] %s40
      %46 = dma.hbm_to_vmem [thread:$0]  %s3, 4096, %s41, [#allocation6], 128, 128, 8
    $region17: #{forward_network.1} parent=1 // pred_fallthru
      _
    // Predicated region
    $region18: #{forward_network.1} parent=1 // pred_check
      _
    $region19: #{forward_network.1} parent=1 // pred_check_branch
      %48 = sbr.rel (0) target = $region21
    $region20: #{forward_network.1} parent=1 // pred_region
      _
    $region21: #{forward_network.1} parent=1 // pred_fallthru
      _
    // Predicated region
    $region22: #{forward_network.1} parent=1 // pred_check
      _
    $region23: #{forward_network.1} parent=1 // pred_check_branch
      %50 = sbr.rel (0) target = $region25
    $region24: #{forward_network.1} parent=1 // pred_region
      %s52 = ssub.s32 10240, 10240
      %53 = vsyncadd [#allocation6], %s52
      %s54 = sshll.u32 [#allocation7], 4
      %s55 = int_to_ptr.vmem [resolvable:$true] %s54
      %60 = dma.hbm_to_vmem [thread:$0]  %s5, 10240, %s55, [#allocation6], 320, 320, 20
    $region25: #{forward_network.1} parent=1 // pred_fallthru
      _
    // Predicated region
    $region26: #{forward_network.1} parent=1 // pred_check
      _
    $region27: #{forward_network.1} parent=1 // pred_check_branch
      %62 = sbr.rel (0) target = $region29
    $region28: #{forward_network.1} parent=1 // pred_region
      _
    $region29: #{forward_network.1} parent=1 // pred_fallthru
      _
    // Predicated region
    $region30: #{forward_network.1} parent=1 // pred_check
      _
    $region31: #{forward_network.1} parent=1 // pred_check_branch
      %64 = sbr.rel (0) target = $region33
    $region32: #{forward_network.1} parent=1 // pred_region
      %65 = dma.done [#allocation3], 2816
    $region33: #{forward_network.1} parent=1 // pred_fallthru
      _
    // Predicated region
    $region34: #{forward_network.1} parent=1 // pred_check
      _
    $region35: #{forward_network.1} parent=1 // pred_check_branch
      %67 = sbr.rel (0) target = $region37
    $region36: #{forward_network.1} parent=1 // pred_region
      %68 = dma.done [#allocation6], 4096
    $region37: #{forward_network.1} parent=1 // pred_fallthru
      _
    // Predicated region
    $region38: #{forward_network.1} parent=1 // pred_check
      _
    $region39: #{forward_network.1} parent=1 // pred_check_branch
      %70 = sbr.rel (0) target = $region41
    $region40: #{forward_network.1} parent=1 // pred_region
      %71 = dma.done [#allocation6], 10240
    $region41: #{forward_network.1} parent=1 // pred_fallthru
      _
    %v72 = vld [vmem:[%s0] sm:$0x3]
    %v73 = vld [vmem:[#allocation2] sm:$0xff]
    %v74 = vld [vmem:[#allocation2 + $0x8] sm:$0xff]
    %v75 = vld [vmem:[#allocation2 + $0x10] sm:$0xff]
    %v76 = vld [vmem:[#allocation2 + $0x18] sm:$0xff]
    %v77 = vld [vmem:[#allocation2 + $0x20] sm:$0xff]
    %v78 = vld [vmem:[#allocation2 + $0x28] sm:$0xff]
    %v79 = vld [vmem:[#allocation2 + $0x30] sm:$0xff]
    %v80 = vld [vmem:[#allocation2 + $0x38] sm:$0xff]
    %v81 = vld [vmem:[#allocation2 + $0x40] sm:$0xff]
    %v82 = vld [vmem:[#allocation2 + $0x48] sm:$0xff]
    %v83 = vld [vmem:[#allocation2 + $0x50] sm:$0xff]
    %v84 = vld [vmem:[#allocation2 + $0x58] sm:$0xff]
    %v85 = vld [vmem:[#allocation2 + $0x60] sm:$0xff]
    %v86 = vld [vmem:[#allocation2 + $0x68] sm:$0xff]
    %v87 = vld [vmem:[#allocation2 + $0x70] sm:$0xff]
    %v88 = vld [vmem:[#allocation2 + $0x78] sm:$0xff]
    %v89 = vld [vmem:[#allocation2 + $0x80] sm:$0xff]
    %v90 = vld [vmem:[#allocation2 + $0x88] sm:$0xff]
    %v91 = vld [vmem:[#allocation2 + $0x90] sm:$0xff]
    %v92 = vld [vmem:[#allocation2 + $0x98] sm:$0xff]
    %v93 = vld [vmem:[#allocation2 + $0xa0] sm:$0xff]
    %v94 = vld [vmem:[#allocation2 + $0xa8] sm:$0xff]
    %v95 = vunpack.c.l.bf16 %v73
    %v96 = vunpack.c.h.bf16 %v73
    %v97 = vunpack.c.l.bf16 %v74
    %v98 = vunpack.c.h.bf16 %v74
    %v99 = vunpack.c.l.bf16 %v75
    %v100 = vunpack.c.h.bf16 %v75
    %v101 = vunpack.c.l.bf16 %v76
    %v102 = vunpack.c.h.bf16 %v76
    %v103 = vunpack.c.l.bf16 %v77
    %v104 = vunpack.c.h.bf16 %v77
    %v105 = vunpack.c.l.bf16 %v78
    %v106 = vunpack.c.h.bf16 %v78
    %v107 = vunpack.c.l.bf16 %v79
    %v108 = vunpack.c.h.bf16 %v79
    %v109 = vunpack.c.l.bf16 %v80
    %v110 = vunpack.c.h.bf16 %v80
    %v111 = vunpack.c.l.bf16 %v81
    %v112 = vunpack.c.h.bf16 %v81
    %v113 = vunpack.c.l.bf16 %v82
    %v114 = vunpack.c.h.bf16 %v82
    %v115 = vunpack.c.l.bf16 %v83
    %v116 = vunpack.c.h.bf16 %v83
    %v117 = vunpack.c.l.bf16 %v84
    %v118 = vunpack.c.h.bf16 %v84
    %v119 = vunpack.c.l.bf16 %v85
    %v120 = vunpack.c.h.bf16 %v85
    %v121 = vunpack.c.l.bf16 %v86
    %v122 = vunpack.c.h.bf16 %v86
    %v123 = vunpack.c.l.bf16 %v87
    %v124 = vunpack.c.h.bf16 %v87
    %v125 = vunpack.c.l.bf16 %v88
    %v126 = vunpack.c.h.bf16 %v88
    %v127 = vunpack.c.l.bf16 %v89
    %v128 = vunpack.c.h.bf16 %v89
    %v129 = vunpack.c.l.bf16 %v90
    %v130 = vunpack.c.h.bf16 %v90
    %v131 = vunpack.c.l.bf16 %v91
    %v132 = vunpack.c.h.bf16 %v91
    %v133 = vunpack.c.l.bf16 %v92
    %v134 = vunpack.c.h.bf16 %v92
    %v135 = vunpack.c.l.bf16 %v93
    %v136 = vunpack.c.h.bf16 %v93
    %v137 = vunpack.c.l.bf16 %v94
    %v138 = vunpack.c.h.bf16 %v94
    %v139 = vld [vmem:[%s2] sm:$0x3]
    %v141 = vlaneseq
    %v142 = vshrl.u32 %v141, 7
    %v143 = vsub.s32 0, %v142
    %v144 = vrot.slane %v72, %v143
    %v145 = vlaneseq
    %v146 = vshrl.u32 %v145, 7
    %v147 = vsub.s32 1, %v146
    %v148 = vrot.slane %v72, %v147
    %v151 = vlaneseq
    %v152 = vshrl.u32 %v151, 7
    %v153 = vsub.s32 0, %v152
    %v154 = vrot.slane %v139, %v153
    %v155 = vlaneseq
    %v156 = vshrl.u32 %v155, 7
    %v157 = vsub.s32 1, %v156
    %v158 = vrot.slane %v139, %v157
    %vm161 = vcmask 392192
    %v162 = vsel %vm161, %v148, 0
    %164 = vmatprep.subr.mxu0 %v126
    %165 = vmatpush1.msra.mxu0 %v125
    %166 = vmatprep.subr.mxu0 %v124
    %167 = vmatpush1.msra.mxu0 %v123
    %168 = vmatprep.subr.mxu0 %v122
    %169 = vmatpush1.msra.mxu0 %v121
    %170 = vmatprep.subr.mxu0 %v120
    %171 = vmatpush1.msra.mxu0 %v119
    %172 = vmatprep.subr.mxu0 %v118
    %173 = vmatpush1.msra.mxu0 %v117
    %174 = vmatprep.subr.mxu0 %v116
    %175 = vmatpush1.msra.mxu0 %v115
    %176 = vmatprep.subr.mxu0 %v114
    %177 = vmatpush1.msra.mxu0 %v113
    %178 = vmatprep.subr.mxu0 %v112
    %179 = vmatpush1.msra.mxu0 %v111
    %180 = vmatprep.subr.mxu0 %v110
    %181 = vmatpush1.msra.mxu0 %v109
    %182 = vmatprep.subr.mxu0 %v108
    %183 = vmatpush1.msra.mxu0 %v107
    %184 = vmatprep.subr.mxu0 %v106
    %185 = vmatpush1.msra.mxu0 %v105
    %186 = vmatprep.subr.mxu0 %v104
    %187 = vmatpush1.msra.mxu0 %v103
    %188 = vmatprep.subr.mxu0 %v102
    %189 = vmatpush1.msra.mxu0 %v101
    %190 = vmatprep.subr.mxu0 %v100
    %191 = vmatpush1.msra.mxu0 %v99
    %192 = vmatprep.subr.mxu0 %v98
    %193 = vmatpush1.msra.mxu0 %v97
    %194 = vmatprep.subr.mxu0 %v96
    %195 = vmatpush1.msra.mxu0 %v95
    %196 = vmatprep.subr.mxu0 0.0
    %197 = vmatpush2.msra.mxu0 0.0
    %198 = vmatprep.subr.mxu0 0.0
    %199 = vmatpush2.msra.mxu0 0.0
    %200 = vmatprep.subr.mxu0 0.0
    %201 = vmatpush2.msra.mxu0 0.0
    %202 = vmatprep.subr.mxu0 0.0
    %203 = vmatpush2.msra.mxu0 0.0
    %204 = vmatprep.subr.mxu0 0.0
    %205 = vmatpush2.msra.mxu0 0.0
    %206 = vmatprep.subr.mxu0 0.0
    %207 = vmatpush2.msra.mxu0 0.0
    %208 = vmatprep.subr.mxu0 0.0
    %209 = vmatpush2.msra.mxu0 0.0
    %210 = vmatprep.subr.mxu0 0.0
    %211 = vmatpush2.msra.mxu0 0.0
    %212 = vmatprep.subr.mxu0 0.0
    %213 = vmatpush2.msra.mxu0 0.0
    %214 = vmatprep.subr.mxu0 0.0
    %215 = vmatpush2.msra.mxu0 0.0
    %216 = vmatprep.subr.mxu0 %v138
    %217 = vmatpush2.msra.mxu0 %v137
    %218 = vmatprep.subr.mxu0 %v136
    %219 = vmatpush2.msra.mxu0 %v135
    %220 = vmatprep.subr.mxu0 %v134
    %221 = vmatpush2.msra.mxu0 %v133
    %222 = vmatprep.subr.mxu0 %v132
    %223 = vmatpush2.msra.mxu0 %v131
    %224 = vmatprep.subr.mxu0 %v130
    %225 = vmatpush2.msra.mxu0 %v129
    %226 = vmatprep.subr.mxu0 %v128
    %227 = vmatpush2.msra.mxu0 %v127
    %228 = vmatprep.mubr.f32.mxu0 %v162
    %229 = vmatmul.mubr.f32.gmra.mxu0 %v144
    %v230 = vpop.f32.mrf.mxu0
    %v231 = vadd.f32 %v154, %v230
    %v232 = vpop.f32.mrf.mxu0
    %v233 = vadd.f32 %v158, %v232
    %234 = vdwg.mxu0
    %v235 = vld [vmem:[#allocation5] sm:$0xff]
    %v236 = vld [vmem:[#allocation5 + $0x8] sm:$0xff]
    %v237 = vld [vmem:[#allocation5 + $0x10] sm:$0xff]
    %v238 = vld [vmem:[#allocation5 + $0x18] sm:$0xff]
    %v239 = vld [vmem:[#allocation5 + $0x20] sm:$0xff]
    %v240 = vld [vmem:[#allocation5 + $0x28] sm:$0xff]
    %v241 = vld [vmem:[#allocation5 + $0x30] sm:$0xff]
    %v242 = vld [vmem:[#allocation5 + $0x38] sm:$0xff]
    %v243 = vld [vmem:[#allocation5 + $0x40] sm:$0xff]
    %v244 = vld [vmem:[#allocation5 + $0x48] sm:$0xff]
    %v245 = vld [vmem:[#allocation5 + $0x50] sm:$0xff]
    %v246 = vld [vmem:[#allocation5 + $0x58] sm:$0xff]
    %v247 = vld [vmem:[#allocation5 + $0x60] sm:$0xff]
    %v248 = vld [vmem:[#allocation5 + $0x68] sm:$0xff]
    %v249 = vld [vmem:[#allocation5 + $0x70] sm:$0xff]
    %v250 = vld [vmem:[#allocation5 + $0x78] sm:$0xff]
    %v251 = vld [vmem:[#allocation5 + $0x80] sm:$0xff]
    %v252 = vld [vmem:[#allocation5 + $0x88] sm:$0xff]
    %v253 = vld [vmem:[#allocation5 + $0x90] sm:$0xff]
    %v254 = vld [vmem:[#allocation5 + $0x98] sm:$0xff]
    %v255 = vld [vmem:[#allocation5 + $0xa0] sm:$0xff]
    %v256 = vld [vmem:[#allocation5 + $0xa8] sm:$0xff]
    %v257 = vld [vmem:[#allocation5 + $0xb0] sm:$0xff]
    %v258 = vld [vmem:[#allocation5 + $0xb8] sm:$0xff]
    %v259 = vld [vmem:[#allocation5 + $0xc0] sm:$0xff]
    %v260 = vld [vmem:[#allocation5 + $0xc8] sm:$0xff]
    %v261 = vld [vmem:[#allocation5 + $0xd0] sm:$0xff]
    %v262 = vld [vmem:[#allocation5 + $0xd8] sm:$0xff]
    %v263 = vld [vmem:[#allocation5 + $0xe0] sm:$0xff]
    %v264 = vld [vmem:[#allocation5 + $0xe8] sm:$0xff]
    %v265 = vld [vmem:[#allocation5 + $0xf0] sm:$0xff]
    %v266 = vld [vmem:[#allocation5 + $0xf8] sm:$0xff]
    %v267 = vunpack.c.l.bf16 %v235
    %v268 = vunpack.c.h.bf16 %v235
    %v269 = vunpack.c.l.bf16 %v236
    %v270 = vunpack.c.h.bf16 %v236
    %v271 = vunpack.c.l.bf16 %v237
    %v272 = vunpack.c.h.bf16 %v237
    %v273 = vunpack.c.l.bf16 %v238
    %v274 = vunpack.c.h.bf16 %v238
    %v275 = vunpack.c.l.bf16 %v239
    %v276 = vunpack.c.h.bf16 %v239
    %v277 = vunpack.c.l.bf16 %v240
    %v278 = vunpack.c.h.bf16 %v240
    %v279 = vunpack.c.l.bf16 %v241
    %v280 = vunpack.c.h.bf16 %v241
    %v281 = vunpack.c.l.bf16 %v242
    %v282 = vunpack.c.h.bf16 %v242
    %v283 = vunpack.c.l.bf16 %v243
    %v284 = vunpack.c.h.bf16 %v243
    %v285 = vunpack.c.l.bf16 %v244
    %v286 = vunpack.c.h.bf16 %v244
    %v287 = vunpack.c.l.bf16 %v245
    %v288 = vunpack.c.h.bf16 %v245
    %v289 = vunpack.c.l.bf16 %v246
    %v290 = vunpack.c.h.bf16 %v246
    %v291 = vunpack.c.l.bf16 %v247
    %v292 = vunpack.c.h.bf16 %v247
    %v293 = vunpack.c.l.bf16 %v248
    %v294 = vunpack.c.h.bf16 %v248
    %v295 = vunpack.c.l.bf16 %v249
    %v296 = vunpack.c.h.bf16 %v249
    %v297 = vunpack.c.l.bf16 %v250
    %v298 = vunpack.c.h.bf16 %v250
    %v299 = vunpack.c.l.bf16 %v251
    %v300 = vunpack.c.h.bf16 %v251
    %v301 = vunpack.c.l.bf16 %v252
    %v302 = vunpack.c.h.bf16 %v252
    %v303 = vunpack.c.l.bf16 %v253
    %v304 = vunpack.c.h.bf16 %v253
    %v305 = vunpack.c.l.bf16 %v254
    %v306 = vunpack.c.h.bf16 %v254
    %v307 = vunpack.c.l.bf16 %v255
    %v308 = vunpack.c.h.bf16 %v255
    %v309 = vunpack.c.l.bf16 %v256
    %v310 = vunpack.c.h.bf16 %v256
    %v311 = vunpack.c.l.bf16 %v257
    %v312 = vunpack.c.h.bf16 %v257
    %v313 = vunpack.c.l.bf16 %v258
    %v314 = vunpack.c.h.bf16 %v258
    %v315 = vunpack.c.l.bf16 %v259
    %v316 = vunpack.c.h.bf16 %v259
    %v317 = vunpack.c.l.bf16 %v260
    %v318 = vunpack.c.h.bf16 %v260
    %v319 = vunpack.c.l.bf16 %v261
    %v320 = vunpack.c.h.bf16 %v261
    %v321 = vunpack.c.l.bf16 %v262
    %v322 = vunpack.c.h.bf16 %v262
    %v323 = vunpack.c.l.bf16 %v263
    %v324 = vunpack.c.h.bf16 %v263
    %v325 = vunpack.c.l.bf16 %v264
    %v326 = vunpack.c.h.bf16 %v264
    %v327 = vunpack.c.l.bf16 %v265
    %v328 = vunpack.c.h.bf16 %v265
    %v329 = vunpack.c.l.bf16 %v266
    %v330 = vunpack.c.h.bf16 %v266
    %v331 = vld [vmem:[%s4] sm:$0x3]
    %v333 = vlaneseq
    %v334 = vshrl.u32 %v333, 7
    %v335 = vsub.s32 0, %v334
    %v336 = vrot.slane %v331, %v335
    %v337 = vlaneseq
    %v338 = vshrl.u32 %v337, 7
    %v339 = vsub.s32 1, %v338
    %v340 = vrot.slane %v331, %v339
    %343 = vmatprep.subr.mxu0 %v298
    %344 = vmatpush1.msra.mxu0 %v297
    %345 = vmatprep.subr.mxu0 %v296
    %346 = vmatpush1.msra.mxu0 %v295
    %347 = vmatprep.subr.mxu0 %v294
    %348 = vmatpush1.msra.mxu0 %v293
    %349 = vmatprep.subr.mxu0 %v292
    %350 = vmatpush1.msra.mxu0 %v291
    %351 = vmatprep.subr.mxu0 %v290
    %352 = vmatpush1.msra.mxu0 %v289
    %353 = vmatprep.subr.mxu0 %v288
    %354 = vmatpush1.msra.mxu0 %v287
    %355 = vmatprep.subr.mxu0 %v286
    %356 = vmatpush1.msra.mxu0 %v285
    %357 = vmatprep.subr.mxu0 %v284
    %358 = vmatpush1.msra.mxu0 %v283
    %359 = vmatprep.subr.mxu0 %v282
    %360 = vmatpush1.msra.mxu0 %v281
    %361 = vmatprep.subr.mxu0 %v280
    %362 = vmatpush1.msra.mxu0 %v279
    %363 = vmatprep.subr.mxu0 %v278
    %364 = vmatpush1.msra.mxu0 %v277
    %365 = vmatprep.subr.mxu0 %v276
    %366 = vmatpush1.msra.mxu0 %v275
    %367 = vmatprep.subr.mxu0 %v274
    %368 = vmatpush1.msra.mxu0 %v273
    %369 = vmatprep.subr.mxu0 %v272
    %370 = vmatpush1.msra.mxu0 %v271
    %371 = vmatprep.subr.mxu0 %v270
    %372 = vmatpush1.msra.mxu0 %v269
    %373 = vmatprep.subr.mxu0 %v268
    %374 = vmatpush1.msra.mxu0 %v267
    %375 = vmatprep.subr.mxu0 %v330
    %376 = vmatpush2.msra.mxu0 %v329
    %377 = vmatprep.subr.mxu0 %v328
    %378 = vmatpush2.msra.mxu0 %v327
    %379 = vmatprep.subr.mxu0 %v326
    %380 = vmatpush2.msra.mxu0 %v325
    %381 = vmatprep.subr.mxu0 %v324
    %382 = vmatpush2.msra.mxu0 %v323
    %383 = vmatprep.subr.mxu0 %v322
    %384 = vmatpush2.msra.mxu0 %v321
    %385 = vmatprep.subr.mxu0 %v320
    %386 = vmatpush2.msra.mxu0 %v319
    %387 = vmatprep.subr.mxu0 %v318
    %388 = vmatpush2.msra.mxu0 %v317
    %389 = vmatprep.subr.mxu0 %v316
    %390 = vmatpush2.msra.mxu0 %v315
    %391 = vmatprep.subr.mxu0 %v314
    %392 = vmatpush2.msra.mxu0 %v313
    %393 = vmatprep.subr.mxu0 %v312
    %394 = vmatpush2.msra.mxu0 %v311
    %395 = vmatprep.subr.mxu0 %v310
    %396 = vmatpush2.msra.mxu0 %v309
    %397 = vmatprep.subr.mxu0 %v308
    %398 = vmatpush2.msra.mxu0 %v307
    %399 = vmatprep.subr.mxu0 %v306
    %400 = vmatpush2.msra.mxu0 %v305
    %401 = vmatprep.subr.mxu0 %v304
    %402 = vmatpush2.msra.mxu0 %v303
    %403 = vmatprep.subr.mxu0 %v302
    %404 = vmatpush2.msra.mxu0 %v301
    %405 = vmatprep.subr.mxu0 %v300
    %406 = vmatpush2.msra.mxu0 %v299
    %407 = vmatprep.mubr.f32.mxu0 %v233
    %408 = vmatmul.mubr.f32.gmra.mxu0 %v231
    %v409 = vpop.f32.mrf.mxu0
    %v410 = vadd.f32 %v336, %v409
    %v411 = vpop.f32.mrf.mxu0
    %v412 = vadd.f32 %v340, %v411
    %413 = vdwg.mxu0
    %v414 = vmax.f32 %v410, 0.0
    %v415 = vmax.f32 %v412, 0.0
    %v416 = vld [vmem:[#allocation7] sm:$0xff]
    %v417 = vld [vmem:[#allocation7 + $0x8] sm:$0xff]
    %v418 = vld [vmem:[#allocation7 + $0x10] sm:$0xf]
    %v419 = vld [vmem:[#allocation7 + $0x14] sm:$0xff]
    %v420 = vld [vmem:[#allocation7 + $0x1c] sm:$0xff]
    %v421 = vld [vmem:[#allocation7 + $0x24] sm:$0xf]
    %v422 = vld [vmem:[#allocation7 + $0x28] sm:$0xff]
    %v423 = vld [vmem:[#allocation7 + $0x30] sm:$0xff]
    %v424 = vld [vmem:[#allocation7 + $0x38] sm:$0xf]
    %v425 = vld [vmem:[#allocation7 + $0x3c] sm:$0xff]
    %v426 = vld [vmem:[#allocation7 + $0x44] sm:$0xff]
    %v427 = vld [vmem:[#allocation7 + $0x4c] sm:$0xf]
    %v428 = vld [vmem:[#allocation7 + $0x50] sm:$0xff]
    %v429 = vld [vmem:[#allocation7 + $0x58] sm:$0xff]
    %v430 = vld [vmem:[#allocation7 + $0x60] sm:$0xf]
    %v431 = vld [vmem:[#allocation7 + $0x64] sm:$0xff]
    %v432 = vld [vmem:[#allocation7 + $0x6c] sm:$0xff]
    %v433 = vld [vmem:[#allocation7 + $0x74] sm:$0xf]
    %v434 = vld [vmem:[#allocation7 + $0x78] sm:$0xff]
    %v435 = vld [vmem:[#allocation7 + $0x80] sm:$0xff]
    %v436 = vld [vmem:[#allocation7 + $0x88] sm:$0xf]
    %v437 = vld [vmem:[#allocation7 + $0x8c] sm:$0xff]
    %v438 = vld [vmem:[#allocation7 + $0x94] sm:$0xff]
    %v439 = vld [vmem:[#allocation7 + $0x9c] sm:$0xf]
    %v440 = vld [vmem:[#allocation7 + $0xa0] sm:$0xff]
    %v441 = vld [vmem:[#allocation7 + $0xa8] sm:$0xff]
    %v442 = vld [vmem:[#allocation7 + $0xb0] sm:$0xf]
    %v443 = vld [vmem:[#allocation7 + $0xb4] sm:$0xff]
    %v444 = vld [vmem:[#allocation7 + $0xbc] sm:$0xff]
    %v445 = vld [vmem:[#allocation7 + $0xc4] sm:$0xf]
    %v446 = vld [vmem:[#allocation7 + $0xc8] sm:$0xff]
    %v447 = vld [vmem:[#allocation7 + $0xd0] sm:$0xff]
    %v448 = vld [vmem:[#allocation7 + $0xd8] sm:$0xf]
    %v449 = vld [vmem:[#allocation7 + $0xdc] sm:$0xff]
    %v450 = vld [vmem:[#allocation7 + $0xe4] sm:$0xff]
    %v451 = vld [vmem:[#allocation7 + $0xec] sm:$0xf]
    %v452 = vld [vmem:[#allocation7 + $0xf0] sm:$0xff]
    %v453 = vld [vmem:[#allocation7 + $0xf8] sm:$0xff]
    %v454 = vld [vmem:[#allocation7 + $0x100] sm:$0xf]
    %v455 = vld [vmem:[#allocation7 + $0x104] sm:$0xff]
    %v456 = vld [vmem:[#allocation7 + $0x10c] sm:$0xff]
    %v457 = vld [vmem:[#allocation7 + $0x114] sm:$0xf]
    %v458 = vld [vmem:[#allocation7 + $0x118] sm:$0xff]
    %v459 = vld [vmem:[#allocation7 + $0x120] sm:$0xff]
    %v460 = vld [vmem:[#allocation7 + $0x128] sm:$0xf]
    %v461 = vld [vmem:[#allocation7 + $0x12c] sm:$0xff]
    %v462 = vld [vmem:[#allocation7 + $0x134] sm:$0xff]
    %v463 = vld [vmem:[#allocation7 + $0x13c] sm:$0xf]
    %v464 = vld [vmem:[#allocation7 + $0x140] sm:$0xff]
    %v465 = vld [vmem:[#allocation7 + $0x148] sm:$0xff]
    %v466 = vld [vmem:[#allocation7 + $0x150] sm:$0xf]
    %v467 = vld [vmem:[#allocation7 + $0x154] sm:$0xff]
    %v468 = vld [vmem:[#allocation7 + $0x15c] sm:$0xff]
    %v469 = vld [vmem:[#allocation7 + $0x164] sm:$0xf]
    %v470 = vld [vmem:[#allocation7 + $0x168] sm:$0xff]
    %v471 = vld [vmem:[#allocation7 + $0x170] sm:$0xff]
    %v472 = vld [vmem:[#allocation7 + $0x178] sm:$0xf]
    %v473 = vld [vmem:[#allocation7 + $0x17c] sm:$0xff]
    %v474 = vld [vmem:[#allocation7 + $0x184] sm:$0xff]
    %v475 = vld [vmem:[#allocation7 + $0x18c] sm:$0xf]
    %v476 = vld [vmem:[#allocation7 + $0x190] sm:$0xff]
    %v477 = vld [vmem:[#allocation7 + $0x198] sm:$0xff]
    %v478 = vld [vmem:[#allocation7 + $0x1a0] sm:$0xf]
    %v479 = vld [vmem:[#allocation7 + $0x1a4] sm:$0xff]
    %v480 = vld [vmem:[#allocation7 + $0x1ac] sm:$0xff]
    %v481 = vld [vmem:[#allocation7 + $0x1b4] sm:$0xf]
    %v482 = vld [vmem:[#allocation7 + $0x1b8] sm:$0xff]
    %v483 = vld [vmem:[#allocation7 + $0x1c0] sm:$0xff]
    %v484 = vld [vmem:[#allocation7 + $0x1c8] sm:$0xf]
    %v485 = vld [vmem:[#allocation7 + $0x1cc] sm:$0xff]
    %v486 = vld [vmem:[#allocation7 + $0x1d4] sm:$0xff]
    %v487 = vld [vmem:[#allocation7 + $0x1dc] sm:$0xf]
    %v488 = vld [vmem:[#allocation7 + $0x1e0] sm:$0xff]
    %v489 = vld [vmem:[#allocation7 + $0x1e8] sm:$0xff]
    %v490 = vld [vmem:[#allocation7 + $0x1f0] sm:$0xf]
    %v491 = vld [vmem:[#allocation7 + $0x1f4] sm:$0xff]
    %v492 = vld [vmem:[#allocation7 + $0x1fc] sm:$0xff]
    %v493 = vld [vmem:[#allocation7 + $0x204] sm:$0xf]
    %v494 = vld [vmem:[#allocation7 + $0x208] sm:$0xff]
    %v495 = vld [vmem:[#allocation7 + $0x210] sm:$0xff]
    %v496 = vld [vmem:[#allocation7 + $0x218] sm:$0xf]
    %v497 = vld [vmem:[#allocation7 + $0x21c] sm:$0xff]
    %v498 = vld [vmem:[#allocation7 + $0x224] sm:$0xff]
    %v499 = vld [vmem:[#allocation7 + $0x22c] sm:$0xf]
    %v500 = vld [vmem:[#allocation7 + $0x230] sm:$0xff]
    %v501 = vld [vmem:[#allocation7 + $0x238] sm:$0xff]
    %v502 = vld [vmem:[#allocation7 + $0x240] sm:$0xf]
    %v503 = vld [vmem:[#allocation7 + $0x244] sm:$0xff]
    %v504 = vld [vmem:[#allocation7 + $0x24c] sm:$0xff]
    %v505 = vld [vmem:[#allocation7 + $0x254] sm:$0xf]
    %v506 = vld [vmem:[#allocation7 + $0x258] sm:$0xff]
    %v507 = vld [vmem:[#allocation7 + $0x260] sm:$0xff]
    %v508 = vld [vmem:[#allocation7 + $0x268] sm:$0xf]
    %v509 = vld [vmem:[#allocation7 + $0x26c] sm:$0xff]
    %v510 = vld [vmem:[#allocation7 + $0x274] sm:$0xff]
    %v511 = vld [vmem:[#allocation7 + $0x27c] sm:$0xf]
    %v512 = vunpack.c.l.bf16 %v416
    %v513 = vunpack.c.h.bf16 %v416
    %v514 = vunpack.c.l.bf16 %v417
    %v515 = vunpack.c.h.bf16 %v417
    %v516 = vunpack.c.l.bf16 %v418
    %v517 = vunpack.c.l.bf16 %v419
    %v518 = vunpack.c.h.bf16 %v419
    %v519 = vunpack.c.l.bf16 %v420
    %v520 = vunpack.c.h.bf16 %v420
    %v521 = vunpack.c.l.bf16 %v421
    %v522 = vunpack.c.l.bf16 %v422
    %v523 = vunpack.c.h.bf16 %v422
    %v524 = vunpack.c.l.bf16 %v423
    %v525 = vunpack.c.h.bf16 %v423
    %v526 = vunpack.c.l.bf16 %v424
    %v527 = vunpack.c.l.bf16 %v425
    %v528 = vunpack.c.h.bf16 %v425
    %v529 = vunpack.c.l.bf16 %v426
    %v530 = vunpack.c.h.bf16 %v426
    %v531 = vunpack.c.l.bf16 %v427
    %v532 = vunpack.c.l.bf16 %v428
    %v533 = vunpack.c.h.bf16 %v428
    %v534 = vunpack.c.l.bf16 %v429
    %v535 = vunpack.c.h.bf16 %v429
    %v536 = vunpack.c.l.bf16 %v430
    %v537 = vunpack.c.l.bf16 %v431
    %v538 = vunpack.c.h.bf16 %v431
    %v539 = vunpack.c.l.bf16 %v432
    %v540 = vunpack.c.h.bf16 %v432
    %v541 = vunpack.c.l.bf16 %v433
    %v542 = vunpack.c.l.bf16 %v434
    %v543 = vunpack.c.h.bf16 %v434
    %v544 = vunpack.c.l.bf16 %v435
    %v545 = vunpack.c.h.bf16 %v435
    %v546 = vunpack.c.l.bf16 %v436
    %v547 = vunpack.c.l.bf16 %v437
    %v548 = vunpack.c.h.bf16 %v437
    %v549 = vunpack.c.l.bf16 %v438
    %v550 = vunpack.c.h.bf16 %v438
    %v551 = vunpack.c.l.bf16 %v439
    %v552 = vunpack.c.l.bf16 %v440
    %v553 = vunpack.c.h.bf16 %v440
    %v554 = vunpack.c.l.bf16 %v441
    %v555 = vunpack.c.h.bf16 %v441
    %v556 = vunpack.c.l.bf16 %v442
    %v557 = vunpack.c.l.bf16 %v443
    %v558 = vunpack.c.h.bf16 %v443
    %v559 = vunpack.c.l.bf16 %v444
    %v560 = vunpack.c.h.bf16 %v444
    %v561 = vunpack.c.l.bf16 %v445
    %v562 = vunpack.c.l.bf16 %v446
    %v563 = vunpack.c.h.bf16 %v446
    %v564 = vunpack.c.l.bf16 %v447
    %v565 = vunpack.c.h.bf16 %v447
    %v566 = vunpack.c.l.bf16 %v448
    %v567 = vunpack.c.l.bf16 %v449
    %v568 = vunpack.c.h.bf16 %v449
    %v569 = vunpack.c.l.bf16 %v450
    %v570 = vunpack.c.h.bf16 %v450
    %v571 = vunpack.c.l.bf16 %v451
    %v572 = vunpack.c.l.bf16 %v452
    %v573 = vunpack.c.h.bf16 %v452
    %v574 = vunpack.c.l.bf16 %v453
    %v575 = vunpack.c.h.bf16 %v453
    %v576 = vunpack.c.l.bf16 %v454
    %v577 = vunpack.c.l.bf16 %v455
    %v578 = vunpack.c.h.bf16 %v455
    %v579 = vunpack.c.l.bf16 %v456
    %v580 = vunpack.c.h.bf16 %v456
    %v581 = vunpack.c.l.bf16 %v457
    %v582 = vunpack.c.l.bf16 %v458
    %v583 = vunpack.c.h.bf16 %v458
    %v584 = vunpack.c.l.bf16 %v459
    %v585 = vunpack.c.h.bf16 %v459
    %v586 = vunpack.c.l.bf16 %v460
    %v587 = vunpack.c.l.bf16 %v461
    %v588 = vunpack.c.h.bf16 %v461
    %v589 = vunpack.c.l.bf16 %v462
    %v590 = vunpack.c.h.bf16 %v462
    %v591 = vunpack.c.l.bf16 %v463
    %v592 = vunpack.c.l.bf16 %v464
    %v593 = vunpack.c.h.bf16 %v464
    %v594 = vunpack.c.l.bf16 %v465
    %v595 = vunpack.c.h.bf16 %v465
    %v596 = vunpack.c.l.bf16 %v466
    %v597 = vunpack.c.l.bf16 %v467
    %v598 = vunpack.c.h.bf16 %v467
    %v599 = vunpack.c.l.bf16 %v468
    %v600 = vunpack.c.h.bf16 %v468
    %v601 = vunpack.c.l.bf16 %v469
    %v602 = vunpack.c.l.bf16 %v470
    %v603 = vunpack.c.h.bf16 %v470
    %v604 = vunpack.c.l.bf16 %v471
    %v605 = vunpack.c.h.bf16 %v471
    %v606 = vunpack.c.l.bf16 %v472
    %v607 = vunpack.c.l.bf16 %v473
    %v608 = vunpack.c.h.bf16 %v473
    %v609 = vunpack.c.l.bf16 %v474
    %v610 = vunpack.c.h.bf16 %v474
    %v611 = vunpack.c.l.bf16 %v475
    %v612 = vunpack.c.l.bf16 %v476
    %v613 = vunpack.c.h.bf16 %v476
    %v614 = vunpack.c.l.bf16 %v477
    %v615 = vunpack.c.h.bf16 %v477
    %v616 = vunpack.c.l.bf16 %v478
    %v617 = vunpack.c.l.bf16 %v479
    %v618 = vunpack.c.h.bf16 %v479
    %v619 = vunpack.c.l.bf16 %v480
    %v620 = vunpack.c.h.bf16 %v480
    %v621 = vunpack.c.l.bf16 %v481
    %v622 = vunpack.c.l.bf16 %v482
    %v623 = vunpack.c.h.bf16 %v482
    %v624 = vunpack.c.l.bf16 %v483
    %v625 = vunpack.c.h.bf16 %v483
    %v626 = vunpack.c.l.bf16 %v484
    %v627 = vunpack.c.l.bf16 %v485
    %v628 = vunpack.c.h.bf16 %v485
    %v629 = vunpack.c.l.bf16 %v486
    %v630 = vunpack.c.h.bf16 %v486
    %v631 = vunpack.c.l.bf16 %v487
    %v632 = vunpack.c.l.bf16 %v488
    %v633 = vunpack.c.h.bf16 %v488
    %v634 = vunpack.c.l.bf16 %v489
    %v635 = vunpack.c.h.bf16 %v489
    %v636 = vunpack.c.l.bf16 %v490
    %v637 = vunpack.c.l.bf16 %v491
    %v638 = vunpack.c.h.bf16 %v491
    %v639 = vunpack.c.l.bf16 %v492
    %v640 = vunpack.c.h.bf16 %v492
    %v641 = vunpack.c.l.bf16 %v493
    %v642 = vunpack.c.l.bf16 %v494
    %v643 = vunpack.c.h.bf16 %v494
    %v644 = vunpack.c.l.bf16 %v495
    %v645 = vunpack.c.h.bf16 %v495
    %v646 = vunpack.c.l.bf16 %v496
    %v647 = vunpack.c.l.bf16 %v497
    %v648 = vunpack.c.h.bf16 %v497
    %v649 = vunpack.c.l.bf16 %v498
    %v650 = vunpack.c.h.bf16 %v498
    %v651 = vunpack.c.l.bf16 %v499
    %v652 = vunpack.c.l.bf16 %v500
    %v653 = vunpack.c.h.bf16 %v500
    %v654 = vunpack.c.l.bf16 %v501
    %v655 = vunpack.c.h.bf16 %v501
    %v656 = vunpack.c.l.bf16 %v502
    %v657 = vunpack.c.l.bf16 %v503
    %v658 = vunpack.c.h.bf16 %v503
    %v659 = vunpack.c.l.bf16 %v504
    %v660 = vunpack.c.h.bf16 %v504
    %v661 = vunpack.c.l.bf16 %v505
    %v662 = vunpack.c.l.bf16 %v506
    %v663 = vunpack.c.h.bf16 %v506
    %v664 = vunpack.c.l.bf16 %v507
    %v665 = vunpack.c.h.bf16 %v507
    %v666 = vunpack.c.l.bf16 %v508
    %v667 = vunpack.c.l.bf16 %v509
    %v668 = vunpack.c.h.bf16 %v509
    %v669 = vunpack.c.l.bf16 %v510
    %v670 = vunpack.c.h.bf16 %v510
    %v671 = vunpack.c.l.bf16 %v511
    %v672 = vld [vmem:[%s6] sm:$0x1f]
    %v674 = vlaneseq
    %v675 = vshrl.u32 %v674, 7
    %v676 = vsub.s32 0, %v675
    %v677 = vrot.slane %v672, %v676
    %v678 = vlaneseq
    %v679 = vshrl.u32 %v678, 7
    %v680 = vsub.s32 1, %v679
    %v681 = vrot.slane %v672, %v680
    %v682 = vlaneseq
    %v683 = vshrl.u32 %v682, 7
    %v684 = vsub.s32 2, %v683
    %v685 = vrot.slane %v672, %v684
    %v686 = vlaneseq
    %v687 = vshrl.u32 %v686, 7
    %v688 = vsub.s32 3, %v687
    %v689 = vrot.slane %v672, %v688
    %v690 = vlaneseq
    %v691 = vshrl.u32 %v690, 7
    %v692 = vsub.s32 4, %v691
    %v693 = vrot.slane %v672, %v692
    %699 = vmatprep.subr.mxu0 %v588
    %700 = vmatpush1.msra.mxu0 %v587
    %701 = vmatprep.subr.mxu0 %v583
    %702 = vmatpush1.msra.mxu0 %v582
    %703 = vmatprep.subr.mxu0 %v578
    %704 = vmatpush1.msra.mxu0 %v577
    %705 = vmatprep.subr.mxu0 %v573
    %706 = vmatpush1.msra.mxu0 %v572
    %707 = vmatprep.subr.mxu0 %v568
    %708 = vmatpush1.msra.mxu0 %v567
    %709 = vmatprep.subr.mxu0 %v563
    %710 = vmatpush1.msra.mxu0 %v562
    %711 = vmatprep.subr.mxu0 %v558
    %712 = vmatpush1.msra.mxu0 %v557
    %713 = vmatprep.subr.mxu0 %v553
    %714 = vmatpush1.msra.mxu0 %v552
    %715 = vmatprep.subr.mxu0 %v548
    %716 = vmatpush1.msra.mxu0 %v547
    %717 = vmatprep.subr.mxu0 %v543
    %718 = vmatpush1.msra.mxu0 %v542
    %719 = vmatprep.subr.mxu0 %v538
    %720 = vmatpush1.msra.mxu0 %v537
    %721 = vmatprep.subr.mxu0 %v533
    %722 = vmatpush1.msra.mxu0 %v532
    %723 = vmatprep.subr.mxu0 %v528
    %724 = vmatpush1.msra.mxu0 %v527
    %725 = vmatprep.subr.mxu0 %v523
    %726 = vmatpush1.msra.mxu0 %v522
    %727 = vmatprep.subr.mxu0 %v518
    %728 = vmatpush1.msra.mxu0 %v517
    %729 = vmatprep.subr.mxu0 %v513
    %730 = vmatpush1.msra.mxu0 %v512
    %731 = vmatprep.subr.mxu0 %v668
    %732 = vmatpush2.msra.mxu0 %v667
    %733 = vmatprep.subr.mxu0 %v663
    %734 = vmatpush2.msra.mxu0 %v662
    %735 = vmatprep.subr.mxu0 %v658
    %736 = vmatpush2.msra.mxu0 %v657
    %737 = vmatprep.subr.mxu0 %v653
    %738 = vmatpush2.msra.mxu0 %v652
    %739 = vmatprep.subr.mxu0 %v648
    %740 = vmatpush2.msra.mxu0 %v647
    %741 = vmatprep.subr.mxu0 %v643
    %742 = vmatpush2.msra.mxu0 %v642
    %743 = vmatprep.subr.mxu0 %v638
    %744 = vmatpush2.msra.mxu0 %v637
    %745 = vmatprep.subr.mxu0 %v633
    %746 = vmatpush2.msra.mxu0 %v632
    %747 = vmatprep.subr.mxu0 %v628
    %748 = vmatpush2.msra.mxu0 %v627
    %749 = vmatprep.subr.mxu0 %v623
    %750 = vmatpush2.msra.mxu0 %v622
    %751 = vmatprep.subr.mxu0 %v618
    %752 = vmatpush2.msra.mxu0 %v617
    %753 = vmatprep.subr.mxu0 %v613
    %754 = vmatpush2.msra.mxu0 %v612
    %755 = vmatprep.subr.mxu0 %v608
    %756 = vmatpush2.msra.mxu0 %v607
    %757 = vmatprep.subr.mxu0 %v603
    %758 = vmatpush2.msra.mxu0 %v602
    %759 = vmatprep.subr.mxu0 %v598
    %760 = vmatpush2.msra.mxu0 %v597
    %761 = vmatprep.subr.mxu0 %v593
    %762 = vmatpush2.msra.mxu0 %v592
    %763 = vmatprep.mubr.f32.mxu0 %v415
    %764 = vmatmul.mubr.f32.gmra.mxu0 %v414
    %v765 = vpop.f32.mrf.mxu0
    %v766 = vadd.f32 %v677, %v765
    %v767 = vpop.f32.mrf.mxu0
    %v768 = vadd.f32 %v681, %v767
    %769 = vdwg.mxu0
    %770 = vmatprep.subr.mxu0 %v590
    %771 = vmatpush1.msra.mxu0 %v589
    %772 = vmatprep.subr.mxu0 %v585
    %773 = vmatpush1.msra.mxu0 %v584
    %774 = vmatprep.subr.mxu0 %v580
    %775 = vmatpush1.msra.mxu0 %v579
    %776 = vmatprep.subr.mxu0 %v575
    %777 = vmatpush1.msra.mxu0 %v574
    %778 = vmatprep.subr.mxu0 %v570
    %779 = vmatpush1.msra.mxu0 %v569
    %780 = vmatprep.subr.mxu0 %v565
    %781 = vmatpush1.msra.mxu0 %v564
    %782 = vmatprep.subr.mxu0 %v560
    %783 = vmatpush1.msra.mxu0 %v559
    %784 = vmatprep.subr.mxu0 %v555
    %785 = vmatpush1.msra.mxu0 %v554
    %786 = vmatprep.subr.mxu0 %v550
    %787 = vmatpush1.msra.mxu0 %v549
    %788 = vmatprep.subr.mxu0 %v545
    %789 = vmatpush1.msra.mxu0 %v544
    %790 = vmatprep.subr.mxu0 %v540
    %791 = vmatpush1.msra.mxu0 %v539
    %792 = vmatprep.subr.mxu0 %v535
    %793 = vmatpush1.msra.mxu0 %v534
    %794 = vmatprep.subr.mxu0 %v530
    %795 = vmatpush1.msra.mxu0 %v529
    %796 = vmatprep.subr.mxu0 %v525
    %797 = vmatpush1.msra.mxu0 %v524
    %798 = vmatprep.subr.mxu0 %v520
    %799 = vmatpush1.msra.mxu0 %v519
    %800 = vmatprep.subr.mxu0 %v515
    %801 = vmatpush1.msra.mxu0 %v514
    %802 = vmatprep.subr.mxu0 %v670
    %803 = vmatpush2.msra.mxu0 %v669
    %804 = vmatprep.subr.mxu0 %v665
    %805 = vmatpush2.msra.mxu0 %v664
    %806 = vmatprep.subr.mxu0 %v660
    %807 = vmatpush2.msra.mxu0 %v659
    %808 = vmatprep.subr.mxu0 %v655
    %809 = vmatpush2.msra.mxu0 %v654
    %810 = vmatprep.subr.mxu0 %v650
    %811 = vmatpush2.msra.mxu0 %v649
    %812 = vmatprep.subr.mxu0 %v645
    %813 = vmatpush2.msra.mxu0 %v644
    %814 = vmatprep.subr.mxu0 %v640
    %815 = vmatpush2.msra.mxu0 %v639
    %816 = vmatprep.subr.mxu0 %v635
    %817 = vmatpush2.msra.mxu0 %v634
    %818 = vmatprep.subr.mxu0 %v630
    %819 = vmatpush2.msra.mxu0 %v629
    %820 = vmatprep.subr.mxu0 %v625
    %821 = vmatpush2.msra.mxu0 %v624
    %822 = vmatprep.subr.mxu0 %v620
    %823 = vmatpush2.msra.mxu0 %v619
    %824 = vmatprep.subr.mxu0 %v615
    %825 = vmatpush2.msra.mxu0 %v614
    %826 = vmatprep.subr.mxu0 %v610
    %827 = vmatpush2.msra.mxu0 %v609
    %828 = vmatprep.subr.mxu0 %v605
    %829 = vmatpush2.msra.mxu0 %v604
    %830 = vmatprep.subr.mxu0 %v600
    %831 = vmatpush2.msra.mxu0 %v599
    %832 = vmatprep.subr.mxu0 %v595
    %833 = vmatpush2.msra.mxu0 %v594
    %834 = vmatprep.mubr.f32.mxu0 %v415
    %835 = vmatmul.mubr.f32.gmra.mxu0 %v414
    %v836 = vpop.f32.mrf.mxu0
    %v837 = vadd.f32 %v685, %v836
    %v838 = vpop.f32.mrf.mxu0
    %v839 = vadd.f32 %v689, %v838
    %840 = vdwg.mxu0
    %841 = vmatprep.subr.mxu0 0.0
    %842 = vmatpush1.msra.mxu0 %v591
    %843 = vmatprep.subr.mxu0 0.0
    %844 = vmatpush1.msra.mxu0 %v586
    %845 = vmatprep.subr.mxu0 0.0
    %846 = vmatpush1.msra.mxu0 %v581
    %847 = vmatprep.subr.mxu0 0.0
    %848 = vmatpush1.msra.mxu0 %v576
    %849 = vmatprep.subr.mxu0 0.0
    %850 = vmatpush1.msra.mxu0 %v571
    %851 = vmatprep.subr.mxu0 0.0
    %852 = vmatpush1.msra.mxu0 %v566
    %853 = vmatprep.subr.mxu0 0.0
    %854 = vmatpush1.msra.mxu0 %v561
    %855 = vmatprep.subr.mxu0 0.0
    %856 = vmatpush1.msra.mxu0 %v556
    %857 = vmatprep.subr.mxu0 0.0
    %858 = vmatpush1.msra.mxu0 %v551
    %859 = vmatprep.subr.mxu0 0.0
    %860 = vmatpush1.msra.mxu0 %v546
    %861 = vmatprep.subr.mxu0 0.0
    %862 = vmatpush1.msra.mxu0 %v541
    %863 = vmatprep.subr.mxu0 0.0
    %864 = vmatpush1.msra.mxu0 %v536
    %865 = vmatprep.subr.mxu0 0.0
    %866 = vmatpush1.msra.mxu0 %v531
    %867 = vmatprep.subr.mxu0 0.0
    %868 = vmatpush1.msra.mxu0 %v526
    %869 = vmatprep.subr.mxu0 0.0
    %870 = vmatpush1.msra.mxu0 %v521
    %871 = vmatprep.subr.mxu0 0.0
    %872 = vmatpush1.msra.mxu0 %v516
    %873 = vmatprep.subr.mxu0 0.0
    %874 = vmatpush2.msra.mxu0 %v671
    %875 = vmatprep.subr.mxu0 0.0
    %876 = vmatpush2.msra.mxu0 %v666
    %877 = vmatprep.subr.mxu0 0.0
    %878 = vmatpush2.msra.mxu0 %v661
    %879 = vmatprep.subr.mxu0 0.0
    %880 = vmatpush2.msra.mxu0 %v656
    %881 = vmatprep.subr.mxu0 0.0
    %882 = vmatpush2.msra.mxu0 %v651
    %883 = vmatprep.subr.mxu0 0.0
    %884 = vmatpush2.msra.mxu0 %v646
    %885 = vmatprep.subr.mxu0 0.0
    %886 = vmatpush2.msra.mxu0 %v641
    %887 = vmatprep.subr.mxu0 0.0
    %888 = vmatpush2.msra.mxu0 %v636
    %889 = vmatprep.subr.mxu0 0.0
    %890 = vmatpush2.msra.mxu0 %v631
    %891 = vmatprep.subr.mxu0 0.0
    %892 = vmatpush2.msra.mxu0 %v626
    %893 = vmatprep.subr.mxu0 0.0
    %894 = vmatpush2.msra.mxu0 %v621
    %895 = vmatprep.subr.mxu0 0.0
    %896 = vmatpush2.msra.mxu0 %v616
    %897 = vmatprep.subr.mxu0 0.0
    %898 = vmatpush2.msra.mxu0 %v611
    %899 = vmatprep.subr.mxu0 0.0
    %900 = vmatpush2.msra.mxu0 %v606
    %901 = vmatprep.subr.mxu0 0.0
    %902 = vmatpush2.msra.mxu0 %v601
    %903 = vmatprep.subr.mxu0 0.0
    %904 = vmatpush2.msra.mxu0 %v596
    %905 = vmatprep.mubr.f32.mxu0 %v415
    %906 = vmatmul.mubr.f32.gmra.mxu0 %v414
    %v907 = vpop.f32.mrf.mxu0
    %v908 = vadd.f32 %v693, %v907
    %v909 = vpop.f32.mrf.mxu0
    %910 = vdwg.mxu0
    %v911 = vmax.f32 %v766, 0.0
    %v912 = vmax.f32 %v768, 0.0
    %v913 = vmax.f32 %v837, 0.0
    %v914 = vmax.f32 %v839, 0.0
    %v915 = vmax.f32 %v908, 0.0
    %vm916 = vcmask 172032
    %v917 = vsel %vm916, %v911, -inf
    %918 = vmax.xlane.f32.xlu0 %v917
    %v919 = vpop.xlane.xlu0 %918
    %v920 = vsub.f32 %v911, %v919
    %v921 = vmul.f32 %v920, 1.442695
    %v922 = vpow.pop %v921
    %v923 = vsel %vm916, %v922, 0.0
    %924 = vadd.xlane.f32.xlu0 %v923
    %v925 = vpop.xlane.xlu0 %924
    %v926 = vlog2.pop %v925
    %v927 = vmul.f32 %v926, 0.6931472
    %v928 = vsub.f32 %v920, %v927
    %929 = vst.msk [vmem:[#allocation8] sm:$0x1] %vm916, %v928
    %vm930 = vcmask 352432
    %v931 = vsel %vm930, %v911, -inf
    %932 = vmax.xlane.f32.xlu0 %v931
    %v933 = vpop.xlane.xlu0 %932
    %v934 = vsub.f32 %v911, %v933
    %v935 = vmul.f32 %v934, 1.442695
    %v936 = vpow.pop %v935
    %938 = vrot.lane.b32.xlu0 %v936, 106
    %v939 = vpop.permute.xlu0 %938
    %v941 = vsel %vm916, %v939, 0.0
    %942 = vadd.xlane.f32.xlu0 %v941
    %v943 = vpop.xlane.xlu0 %942
    %v944 = vlog2.pop %v943
    %v945 = vmul.f32 %v944, 0.6931472
    %v946 = vsub.f32 %v934, %v945
    %948 = vrot.lane.b32.xlu0 %v946, 106
    %v949 = vpop.permute.xlu0 %948
    %951 = vst.msk [vmem:[#allocation8 + $0x1] sm:$0x1] %vm916, %v949
    %vm952 = vcmask 532832
    %v953 = vsel %vm952, %v911, -inf
    %954 = vmax.xlane.f32.xlu0 %v953
    %v955 = vpop.xlane.xlu0 %954
    %v956 = vsub.f32 %v911, %v955
    %v957 = vmul.f32 %v956, 1.442695
    %v958 = vpow.pop %v957
    %960 = vrot.lane.b32.xlu0 %v958, 84
    %v961 = vpop.permute.xlu0 %960
    %v963 = vsel %vm916, %v961, 0.0
    %964 = vadd.xlane.f32.xlu0 %v963
    %v965 = vpop.xlane.xlu0 %964
    %v966 = vlog2.pop %v965
    %v967 = vmul.f32 %v966, 0.6931472
    %v968 = vsub.f32 %v956, %v967
    %970 = vrot.lane.b32.xlu0 %v968, 84
    %v971 = vpop.permute.xlu0 %970
    %973 = vst.msk [vmem:[#allocation8 + $0x2] sm:$0x1] %vm916, %v971
    %vm974 = vcmask 713232
    %v975 = vsel %vm974, %v911, -inf
    %976 = vmax.xlane.f32.xlu0 %v975
    %v977 = vpop.xlane.xlu0 %976
    %v978 = vsub.f32 %v911, %v977
    %v979 = vmul.f32 %v978, 1.442695
    %v980 = vpow.pop %v979
    %982 = vrot.lane.b32.xlu0 %v980, 62
    %v983 = vpop.permute.xlu0 %982
    %v985 = vsel %vm916, %v983, 0.0
    %986 = vadd.xlane.f32.xlu0 %v985
    %v987 = vpop.xlane.xlu0 %986
    %v988 = vlog2.pop %v987
    %v989 = vmul.f32 %v988, 0.6931472
    %v990 = vsub.f32 %v978, %v989
    %992 = vrot.lane.b32.xlu0 %v990, 62
    %v993 = vpop.permute.xlu0 %992
    %995 = vst.msk [vmem:[#allocation8 + $0x3] sm:$0x1] %vm916, %v993
    %vm996 = vcmask 893632
    %v997 = vsel %vm996, %v911, -inf
    %998 = vmax.xlane.f32.xlu0 %v997
    %v999 = vpop.xlane.xlu0 %998
    %v1000 = vsub.f32 %v911, %v999
    %v1001 = vmul.f32 %v1000, 1.442695
    %v1002 = vpow.pop %v1001
    %1004 = vrot.lane.b32.xlu0 %v1002, 40
    %v1005 = vpop.permute.xlu0 %1004
    %v1007 = vsel %vm916, %v1005, 0.0
    %1008 = vadd.xlane.f32.xlu0 %v1007
    %v1009 = vpop.xlane.xlu0 %1008
    %v1010 = vlog2.pop %v1009
    %v1011 = vmul.f32 %v1010, 0.6931472
    %v1012 = vsub.f32 %v1000, %v1011
    %1014 = vrot.lane.b32.xlu0 %v1012, 40
    %v1015 = vpop.permute.xlu0 %1014
    %1017 = vst.msk [vmem:[#allocation8 + $0x4] sm:$0x1] %vm916, %v1015
    %vm1018 = vcmask 1041264
    %v1019 = vsel %vm1018, %v911, -inf
    %vm1020 = vcmask 24576
    %v1021 = vsel %vm1020, %v912, -inf
    %v1022 = vmax.f32 %v1019, %v1021
    %1023 = vmax.xlane.f32.xlu0 %v1022
    %v1024 = vpop.xlane.xlu0 %1023
    %v1025 = vsub.f32 %v911, %v1024
    %v1026 = vsub.f32 %v912, %v1024
    %v1027 = vmul.f32 %v1025, 1.442695
    %v1028 = vpow.pop %v1027
    %v1029 = vmul.f32 %v1026, 1.442695
    %v1030 = vpow.pop %v1029
    %1033 = vrot.lane.b32.xlu0 %v1028, 18
    %v1034 = vpop.permute.xlu0 %1033
    %1035 = vrot.lane.b32.xlu0 %v1030, 18
    %v1036 = vpop.permute.xlu0 %1035
    %vm1037 = vcmask 146432
    %v1038 = vsel %vm1037, %v1034, %v1036
    %v1040 = vsel %vm916, %v1038, 0.0
    %1041 = vadd.xlane.f32.xlu0 %v1040
    %v1042 = vpop.xlane.xlu0 %1041
    %v1043 = vlog2.pop %v1042
    %v1044 = vmul.f32 %v1043, 0.6931472
    %v1045 = vsub.f32 %v1025, %v1044
    %v1046 = vsub.f32 %v1026, %v1044
    %1049 = vrot.lane.b32.xlu0 %v1045, 18
    %v1050 = vpop.permute.xlu0 %1049
    %1051 = vrot.lane.b32.xlu0 %v1046, 18
    %v1052 = vpop.permute.xlu0 %1051
    %v1053 = vsel %vm1037, %v1050, %v1052
    %1055 = vst.msk [vmem:[#allocation8 + $0x5] sm:$0x1] %vm916, %v1053
    %vm1056 = vcmask 204832
    %v1057 = vsel %vm1056, %v912, -inf
    %1058 = vmax.xlane.f32.xlu0 %v1057
    %v1059 = vpop.xlane.xlu0 %1058
    %v1060 = vsub.f32 %v912, %v1059
    %v1061 = vmul.f32 %v1060, 1.442695
    %v1062 = vpow.pop %v1061
    %1064 = vrot.lane.b32.xlu0 %v1062, 124
    %v1065 = vpop.permute.xlu0 %1064
    %v1067 = vsel %vm916, %v1065, 0.0
    %1068 = vadd.xlane.f32.xlu0 %v1067
    %v1069 = vpop.xlane.xlu0 %1068
    %v1070 = vlog2.pop %v1069
    %v1071 = vmul.f32 %v1070, 0.6931472
    %v1072 = vsub.f32 %v1060, %v1071
    %1074 = vrot.lane.b32.xlu0 %v1072, 124
    %v1075 = vpop.permute.xlu0 %1074
    %1077 = vst.msk [vmem:[#allocation8 + $0x6] sm:$0x1] %vm916, %v1075
    %vm1078 = vcmask 385232
    %v1079 = vsel %vm1078, %v912, -inf
    %1080 = vmax.xlane.f32.xlu0 %v1079
    %v1081 = vpop.xlane.xlu0 %1080
    %v1082 = vsub.f32 %v912, %v1081
    %v1083 = vmul.f32 %v1082, 1.442695
    %v1084 = vpow.pop %v1083
    %1086 = vrot.lane.b32.xlu0 %v1084, 102
    %v1087 = vpop.permute.xlu0 %1086
    %v1089 = vsel %vm916, %v1087, 0.0
    %1090 = vadd.xlane.f32.xlu0 %v1089
    %v1091 = vpop.xlane.xlu0 %1090
    %v1092 = vlog2.pop %v1091
    %v1093 = vmul.f32 %v1092, 0.6931472
    %v1094 = vsub.f32 %v1082, %v1093
    %1096 = vrot.lane.b32.xlu0 %v1094, 102
    %v1097 = vpop.permute.xlu0 %1096
    %1099 = vst.msk [vmem:[#allocation8 + $0x7] sm:$0x1] %vm916, %v1097
    %vm1100 = vcmask 565632
    %v1101 = vsel %vm1100, %v912, -inf
    %1102 = vmax.xlane.f32.xlu0 %v1101
    %v1103 = vpop.xlane.xlu0 %1102
    %v1104 = vsub.f32 %v912, %v1103
    %v1105 = vmul.f32 %v1104, 1.442695
    %v1106 = vpow.pop %v1105
    %1108 = vrot.lane.b32.xlu0 %v1106, 80
    %v1109 = vpop.permute.xlu0 %1108
    %v1111 = vsel %vm916, %v1109, 0.0
    %1112 = vadd.xlane.f32.xlu0 %v1111
    %v1113 = vpop.xlane.xlu0 %1112
    %v1114 = vlog2.pop %v1113
    %v1115 = vmul.f32 %v1114, 0.6931472
    %v1116 = vsub.f32 %v1104, %v1115
    %1118 = vrot.lane.b32.xlu0 %v1116, 80
    %v1119 = vpop.permute.xlu0 %1118
    %1121 = vst.msk [vmem:[#allocation9] sm:$0x1] %vm916, %v1119
    %vm1122 = vcmask 746032
    %v1123 = vsel %vm1122, %v912, -inf
    %1124 = vmax.xlane.f32.xlu0 %v1123
    %v1125 = vpop.xlane.xlu0 %1124
    %v1126 = vsub.f32 %v912, %v1125
    %v1127 = vmul.f32 %v1126, 1.442695
    %v1128 = vpow.pop %v1127
    %1130 = vrot.lane.b32.xlu0 %v1128, 58
    %v1131 = vpop.permute.xlu0 %1130
    %v1133 = vsel %vm916, %v1131, 0.0
    %1134 = vadd.xlane.f32.xlu0 %v1133
    %v1135 = vpop.xlane.xlu0 %1134
    %v1136 = vlog2.pop %v1135
    %v1137 = vmul.f32 %v1136, 0.6931472
    %v1138 = vsub.f32 %v1126, %v1137
    %1140 = vrot.lane.b32.xlu0 %v1138, 58
    %v1141 = vpop.permute.xlu0 %1140
    %1143 = vst.msk [vmem:[#allocation9 + $0x1] sm:$0x1] %vm916, %v1141
    %vm1144 = vcmask 926432
    %v1145 = vsel %vm1144, %v912, -inf
    %1146 = vmax.xlane.f32.xlu0 %v1145
    %v1147 = vpop.xlane.xlu0 %1146
    %v1148 = vsub.f32 %v912, %v1147
    %v1149 = vmul.f32 %v1148, 1.442695
    %v1150 = vpow.pop %v1149
    %1152 = vrot.lane.b32.xlu0 %v1150, 36
    %v1153 = vpop.permute.xlu0 %1152
    %v1155 = vsel %vm916, %v1153, 0.0
    %1156 = vadd.xlane.f32.xlu0 %v1155
    %v1157 = vpop.xlane.xlu0 %1156
    %v1158 = vlog2.pop %v1157
    %v1159 = vmul.f32 %v1158, 0.6931472
    %v1160 = vsub.f32 %v1148, %v1159
    %1162 = vrot.lane.b32.xlu0 %v1160, 36
    %v1163 = vpop.permute.xlu0 %1162
    %1165 = vst.msk [vmem:[#allocation9 + $0x2] sm:$0x1] %vm916, %v1163
    %vm1166 = vcmask 1041296
    %v1167 = vsel %vm1166, %v912, -inf
    %vm1168 = vcmask 57344
    %v1169 = vsel %vm1168, %v913, -inf
    %v1170 = vmax.f32 %v1167, %v1169
    %1171 = vmax.xlane.f32.xlu0 %v1170
    %v1172 = vpop.xlane.xlu0 %1171
    %v1173 = vsub.f32 %v912, %v1172
    %v1174 = vsub.f32 %v913, %v1172
    %v1175 = vmul.f32 %v1173, 1.442695
    %v1176 = vpow.pop %v1175
    %v1177 = vmul.f32 %v1174, 1.442695
    %v1178 = vpow.pop %v1177
    %1181 = vrot.lane.b32.xlu0 %v1176, 14
    %v1182 = vpop.permute.xlu0 %1181
    %1183 = vrot.lane.b32.xlu0 %v1178, 14
    %v1184 = vpop.permute.xlu0 %1183
    %vm1185 = vcmask 113664
    %v1186 = vsel %vm1185, %v1182, %v1184
    %v1188 = vsel %vm916, %v1186, 0.0
    %1189 = vadd.xlane.f32.xlu0 %v1188
    %v1190 = vpop.xlane.xlu0 %1189
    %v1191 = vlog2.pop %v1190
    %v1192 = vmul.f32 %v1191, 0.6931472
    %v1193 = vsub.f32 %v1173, %v1192
    %v1194 = vsub.f32 %v1174, %v1192
    %1197 = vrot.lane.b32.xlu0 %v1193, 14
    %v1198 = vpop.permute.xlu0 %1197
    %1199 = vrot.lane.b32.xlu0 %v1194, 14
    %v1200 = vpop.permute.xlu0 %1199
    %v1201 = vsel %vm1185, %v1198, %v1200
    %1203 = vst.msk [vmem:[#allocation9 + $0x3] sm:$0x1] %vm916, %v1201
    %vm1204 = vcmask 237632
    %v1205 = vsel %vm1204, %v913, -inf
    %1206 = vmax.xlane.f32.xlu0 %v1205
    %v1207 = vpop.xlane.xlu0 %1206
    %v1208 = vsub.f32 %v913, %v1207
    %v1209 = vmul.f32 %v1208, 1.442695
    %v1210 = vpow.pop %v1209
    %1212 = vrot.lane.b32.xlu0 %v1210, 120
    %v1213 = vpop.permute.xlu0 %1212
    %v1215 = vsel %vm916, %v1213, 0.0
    %1216 = vadd.xlane.f32.xlu0 %v1215
    %v1217 = vpop.xlane.xlu0 %1216
    %v1218 = vlog2.pop %v1217
    %v1219 = vmul.f32 %v1218, 0.6931472
    %v1220 = vsub.f32 %v1208, %v1219
    %1222 = vrot.lane.b32.xlu0 %v1220, 120
    %v1223 = vpop.permute.xlu0 %1222
    %1225 = vst.msk [vmem:[#allocation9 + $0x4] sm:$0x1] %vm916, %v1223
    %vm1226 = vcmask 418032
    %v1227 = vsel %vm1226, %v913, -inf
    %1228 = vmax.xlane.f32.xlu0 %v1227
    %v1229 = vpop.xlane.xlu0 %1228
    %v1230 = vsub.f32 %v913, %v1229
    %v1231 = vmul.f32 %v1230, 1.442695
    %v1232 = vpow.pop %v1231
    %1234 = vrot.lane.b32.xlu0 %v1232, 98
    %v1235 = vpop.permute.xlu0 %1234
    %v1237 = vsel %vm916, %v1235, 0.0
    %1238 = vadd.xlane.f32.xlu0 %v1237
    %v1239 = vpop.xlane.xlu0 %1238
    %v1240 = vlog2.pop %v1239
    %v1241 = vmul.f32 %v1240, 0.6931472
    %v1242 = vsub.f32 %v1230, %v1241
    %1244 = vrot.lane.b32.xlu0 %v1242, 98
    %v1245 = vpop.permute.xlu0 %1244
    %1247 = vst.msk [vmem:[#allocation9 + $0x5] sm:$0x1] %vm916, %v1245
    %vm1248 = vcmask 598432
    %v1249 = vsel %vm1248, %v913, -inf
    %1250 = vmax.xlane.f32.xlu0 %v1249
    %v1251 = vpop.xlane.xlu0 %1250
    %v1252 = vsub.f32 %v913, %v1251
    %v1253 = vmul.f32 %v1252, 1.442695
    %v1254 = vpow.pop %v1253
    %1256 = vrot.lane.b32.xlu0 %v1254, 76
    %v1257 = vpop.permute.xlu0 %1256
    %v1259 = vsel %vm916, %v1257, 0.0
    %1260 = vadd.xlane.f32.xlu0 %v1259
    %v1261 = vpop.xlane.xlu0 %1260
    %v1262 = vlog2.pop %v1261
    %v1263 = vmul.f32 %v1262, 0.6931472
    %v1264 = vsub.f32 %v1252, %v1263
    %1266 = vrot.lane.b32.xlu0 %v1264, 76
    %v1267 = vpop.permute.xlu0 %1266
    %1269 = vst.msk [vmem:[#allocation9 + $0x6] sm:$0x1] %vm916, %v1267
    %vm1270 = vcmask 778832
    %v1271 = vsel %vm1270, %v913, -inf
    %1272 = vmax.xlane.f32.xlu0 %v1271
    %v1273 = vpop.xlane.xlu0 %1272
    %v1274 = vsub.f32 %v913, %v1273
    %v1275 = vmul.f32 %v1274, 1.442695
    %v1276 = vpow.pop %v1275
    %1278 = vrot.lane.b32.xlu0 %v1276, 54
    %v1279 = vpop.permute.xlu0 %1278
    %v1281 = vsel %vm916, %v1279, 0.0
    %1282 = vadd.xlane.f32.xlu0 %v1281
    %v1283 = vpop.xlane.xlu0 %1282
    %v1284 = vlog2.pop %v1283
    %v1285 = vmul.f32 %v1284, 0.6931472
    %v1286 = vsub.f32 %v1274, %v1285
    %1288 = vrot.lane.b32.xlu0 %v1286, 54
    %v1289 = vpop.permute.xlu0 %1288
    %1291 = vst.msk [vmem:[#allocation9 + $0x7] sm:$0x1] %vm916, %v1289
    %vm1292 = vcmask 1016576
    %v1293 = vsel %vm1292, %v913, -inf
    %1294 = vmax.xlane.f32.xlu0 %v1293
    %v1295 = vpop.xlane.xlu0 %1294
    %v1296 = vsub.f32 %v913, %v1295
    %v1297 = vmul.f32 %v1296, 1.442695
    %v1298 = vpow.pop %v1297
    %1300 = vrot.lane.b32.xlu0 %v1298, 32
    %v1301 = vpop.permute.xlu0 %1300
    %vm1303 = vcmask 229376
    %v1304 = vsel %vm1303, %v1301, 0.0
    %1305 = vadd.xlane.f32.xlu0 %v1304
    %v1306 = vpop.xlane.xlu0 %1305
    %v1307 = vlog2.pop %v1306
    %v1308 = vmul.f32 %v1307, 0.6931472
    %v1309 = vsub.f32 %v1296, %v1308
    %1311 = vrot.lane.b32.xlu0 %v1309, 32
    %v1312 = vpop.permute.xlu0 %1311
    %1314 = vst.msk [vmem:[#allocation11] sm:$0x1] %vm1303, %v1312
    %vm1315 = vcmask 1041384
    %v1316 = vsel %vm1315, %v913, -inf
    %vm1317 = vcmask 204800
    %v1318 = vsel %vm1317, %v914, -inf
    %v1319 = vmax.f32 %v1316, %v1318
    %1320 = vmax.xlane.f32.xlu0 %v1319
    %v1321 = vpop.xlane.xlu0 %1320
    %v1322 = vsub.f32 %v913, %v1321
    %v1323 = vsub.f32 %v914, %v1321
    %v1324 = vmul.f32 %v1322, 1.442695
    %v1325 = vpow.pop %v1324
    %v1326 = vmul.f32 %v1323, 1.442695
    %v1327 = vpow.pop %v1326
    %1330 = vrot.lane.b32.xlu0 %v1325, 3
    %v1331 = vpop.permute.xlu0 %1330
    %1332 = vrot.lane.b32.xlu0 %v1327, 3
    %v1333 = vpop.permute.xlu0 %1332
    %vm1334 = vcmask 23552
    %v1335 = vsel %vm1334, %v1331, %v1333
    %v1337 = vsel %vm1303, %v1335, 0.0
    %1338 = vadd.xlane.f32.xlu0 %v1337
    %v1339 = vpop.xlane.xlu0 %1338
    %v1340 = vlog2.pop %v1339
    %v1341 = vmul.f32 %v1340, 0.6931472
    %v1342 = vsub.f32 %v1322, %v1341
    %v1343 = vsub.f32 %v1323, %v1341
    %1346 = vrot.lane.b32.xlu0 %v1342, 3
    %v1347 = vpop.permute.xlu0 %1346
    %1348 = vrot.lane.b32.xlu0 %v1343, 3
    %v1349 = vpop.permute.xlu0 %1348
    %v1350 = vsel %vm1334, %v1347, %v1349
    %1352 = vst.msk [vmem:[#allocation11 + $0x1] sm:$0x1] %vm1303, %v1350
    %vm1353 = vcmask 442576
    %v1354 = vsel %vm1353, %v914, -inf
    %1355 = vmax.xlane.f32.xlu0 %v1354
    %v1356 = vpop.xlane.xlu0 %1355
    %v1357 = vsub.f32 %v914, %v1356
    %v1358 = vmul.f32 %v1357, 1.442695
    %v1359 = vpow.pop %v1358
    %1361 = vrot.lane.b32.xlu0 %v1359, 102
    %v1362 = vpop.permute.xlu0 %1361
    %v1364 = vsel %vm1303, %v1362, 0.0
    %1365 = vadd.xlane.f32.xlu0 %v1364
    %v1366 = vpop.xlane.xlu0 %1365
    %v1367 = vlog2.pop %v1366
    %v1368 = vmul.f32 %v1367, 0.6931472
    %v1369 = vsub.f32 %v1357, %v1368
    %1371 = vrot.lane.b32.xlu0 %v1369, 102
    %v1372 = vpop.permute.xlu0 %1371
    %1374 = vst.msk [vmem:[#allocation11 + $0x2] sm:$0x1] %vm1303, %v1372
    %vm1375 = vcmask 680376
    %v1376 = vsel %vm1375, %v914, -inf
    %1377 = vmax.xlane.f32.xlu0 %v1376
    %v1378 = vpop.xlane.xlu0 %1377
    %v1379 = vsub.f32 %v914, %v1378
    %v1380 = vmul.f32 %v1379, 1.442695
    %v1381 = vpow.pop %v1380
    %1383 = vrot.lane.b32.xlu0 %v1381, 73
    %v1384 = vpop.permute.xlu0 %1383
    %v1386 = vsel %vm1303, %v1384, 0.0
    %1387 = vadd.xlane.f32.xlu0 %v1386
    %v1388 = vpop.xlane.xlu0 %1387
    %v1389 = vlog2.pop %v1388
    %v1390 = vmul.f32 %v1389, 0.6931472
    %v1391 = vsub.f32 %v1379, %v1390
    %1393 = vrot.lane.b32.xlu0 %v1391, 73
    %v1394 = vpop.permute.xlu0 %1393
    %1396 = vst.msk [vmem:[#allocation11 + $0x3] sm:$0x1] %vm1303, %v1394
    %vm1397 = vcmask 918176
    %v1398 = vsel %vm1397, %v914, -inf
    %1399 = vmax.xlane.f32.xlu0 %v1398
    %v1400 = vpop.xlane.xlu0 %1399
    %v1401 = vsub.f32 %v914, %v1400
    %v1402 = vmul.f32 %v1401, 1.442695
    %v1403 = vpow.pop %v1402
    %1405 = vrot.lane.b32.xlu0 %v1403, 44
    %v1406 = vpop.permute.xlu0 %1405
    %v1408 = vsel %vm1303, %v1406, 0.0
    %1409 = vadd.xlane.f32.xlu0 %v1408
    %v1410 = vpop.xlane.xlu0 %1409
    %v1411 = vlog2.pop %v1410
    %v1412 = vmul.f32 %v1411, 0.6931472
    %v1413 = vsub.f32 %v1401, %v1412
    %1415 = vrot.lane.b32.xlu0 %v1413, 44
    %v1416 = vpop.permute.xlu0 %1415
    %1418 = vst.msk [vmem:[#allocation11 + $0x4] sm:$0x1] %vm1303, %v1416
    %vm1419 = vcmask 1041288
    %v1420 = vsel %vm1419, %v914, -inf
    %vm1421 = vcmask 106496
    %v1422 = vsel %vm1421, %v915, -inf
    %v1423 = vmax.f32 %v1420, %v1422
    %1424 = vmax.xlane.f32.xlu0 %v1423
    %v1425 = vpop.xlane.xlu0 %1424
    %v1426 = vsub.f32 %v914, %v1425
    %v1427 = vsub.f32 %v915, %v1425
    %v1428 = vmul.f32 %v1426, 1.442695
    %v1429 = vpow.pop %v1428
    %v1430 = vmul.f32 %v1427, 1.442695
    %v1431 = vpow.pop %v1430
    %1434 = vrot.lane.b32.xlu0 %v1429, 15
    %v1435 = vpop.permute.xlu0 %1434
    %1436 = vrot.lane.b32.xlu0 %v1431, 15
    %v1437 = vpop.permute.xlu0 %1436
    %vm1438 = vcmask 121856
    %v1439 = vsel %vm1438, %v1435, %v1437
    %v1441 = vsel %vm1303, %v1439, 0.0
    %1442 = vadd.xlane.f32.xlu0 %v1441
    %v1443 = vpop.xlane.xlu0 %1442
    %v1444 = vlog2.pop %v1443
    %v1445 = vmul.f32 %v1444, 0.6931472
    %v1446 = vsub.f32 %v1426, %v1445
    %v1447 = vsub.f32 %v1427, %v1445
    %1450 = vrot.lane.b32.xlu0 %v1446, 15
    %v1451 = vpop.permute.xlu0 %1450
    %1452 = vrot.lane.b32.xlu0 %v1447, 15
    %v1453 = vpop.permute.xlu0 %1452
    %v1454 = vsel %vm1438, %v1451, %v1453
    %1456 = vst.msk [vmem:[#allocation11 + $0x5] sm:$0x1] %vm1303, %v1454
    %vm1457 = vcmask 344176
    %v1458 = vsel %vm1457, %v915, -inf
    %1459 = vmax.xlane.f32.xlu0 %v1458
    %v1460 = vpop.xlane.xlu0 %1459
    %v1461 = vsub.f32 %v915, %v1460
    %v1462 = vmul.f32 %v1461, 1.442695
    %v1463 = vpow.pop %v1462
    %1465 = vrot.lane.b32.xlu0 %v1463, 114
    %v1466 = vpop.permute.xlu0 %1465
    %v1468 = vsel %vm1303, %v1466, 0.0
    %1469 = vadd.xlane.f32.xlu0 %v1468
    %v1470 = vpop.xlane.xlu0 %1469
    %v1471 = vlog2.pop %v1470
    %v1472 = vmul.f32 %v1471, 0.6931472
    %v1473 = vsub.f32 %v1461, %v1472
    %1475 = vrot.lane.b32.xlu0 %v1473, 114
    %v1476 = vpop.permute.xlu0 %1475
    %1478 = vst.msk [vmem:[#allocation11 + $0x6] sm:$0x1] %vm1303, %v1476
    %vm1479 = vcmask 581976
    %v1480 = vsel %vm1479, %v915, -inf
    %1481 = vmax.xlane.f32.xlu0 %v1480
    %v1482 = vpop.xlane.xlu0 %1481
    %v1483 = vsub.f32 %v915, %v1482
    %v1484 = vmul.f32 %v1483, 1.442695
    %v1485 = vpow.pop %v1484
    %1487 = vrot.lane.b32.xlu0 %v1485, 85
    %v1488 = vpop.permute.xlu0 %1487
    %v1490 = vsel %vm1303, %v1488, 0.0
    %1491 = vadd.xlane.f32.xlu0 %v1490
    %v1492 = vpop.xlane.xlu0 %1491
    %v1493 = vlog2.pop %v1492
    %v1494 = vmul.f32 %v1493, 0.6931472
    %v1495 = vsub.f32 %v1483, %v1494
    %1497 = vrot.lane.b32.xlu0 %v1495, 85
    %v1498 = vpop.permute.xlu0 %1497
    %1500 = vst.msk [vmem:[#allocation11 + $0x7] sm:$0x1] %vm1303, %v1498
    // Predicated region
    $region42: #{forward_network.1} parent=1 // pred_check
      _
    $region43: #{forward_network.1} parent=1 // pred_check_branch
      %1502 = sbr.rel (0) target = $region45
    $region44: #{forward_network.1} parent=1 // pred_region
      %s1504 = ssub.s32 128, 128
      %1505 = vsyncadd [#allocation4], %s1504
      %s1507 = sshll.u32 [#allocation8], 4
      %s1508 = int_to_ptr.vmem [resolvable:$true] %s1507
      %1510 = dma.vmem_to_hbm [thread:$0]  %s1508, 128, %s7, [#allocation4]
    $region45: #{forward_network.1} parent=1 // pred_fallthru
      _
    // Predicated region
    $region46: #{forward_network.1} parent=1 // pred_check
      _
    $region47: #{forward_network.1} parent=1 // pred_check_branch
      %1512 = sbr.rel (0) target = $region49
    $region48: #{forward_network.1} parent=1 // pred_region
      %s1514 = ssub.s32 128, 128
      %1515 = vsyncadd [#allocation10], %s1514
      %s1517 = sshll.u32 [#allocation9], 4
      %s1518 = int_to_ptr.vmem [resolvable:$true] %s1517
      %1520 = dma.vmem_to_hbm [thread:$0]  %s1518, 128, %s8, [#allocation10]
    $region49: #{forward_network.1} parent=1 // pred_fallthru
      _
    // Predicated region
    $region50: #{forward_network.1} parent=1 // pred_check
      _
    $region51: #{forward_network.1} parent=1 // pred_check_branch
      %1522 = sbr.rel (0) target = $region53
    $region52: #{forward_network.1} parent=1 // pred_region
      %s1524 = ssub.s32 128, 128
      %1525 = vsyncadd [#allocation10], %s1524
      %s1527 = sshll.u32 [#allocation11], 4
      %s1528 = int_to_ptr.vmem [resolvable:$true] %s1527
      %1530 = dma.vmem_to_hbm [thread:$0]  %s1528, 128, %s9, [#allocation10]
    $region53: #{forward_network.1} parent=1 // pred_fallthru
      _
    // Predicated region
    $region54: #{forward_network.1} parent=1 // pred_check
      _
    $region55: #{forward_network.1} parent=1 // pred_check_branch
      %1532 = sbr.rel (0) target = $region57
    $region56: #{forward_network.1} parent=1 // pred_region
      %1533 = dma.done [#allocation4], 128
    $region57: #{forward_network.1} parent=1 // pred_fallthru
      _
    // Predicated region
    $region58: #{forward_network.1} parent=1 // pred_check
      _
    $region59: #{forward_network.1} parent=1 // pred_check_branch
      %1535 = sbr.rel (0) target = $region61
    $region60: #{forward_network.1} parent=1 // pred_region
      %1536 = dma.done [#allocation10], 128
    $region61: #{forward_network.1} parent=1 // pred_fallthru
      _
    // Predicated region
    $region62: #{forward_network.1} parent=1 // pred_check
      _
    $region63: #{forward_network.1} parent=1 // pred_check_branch
      %1538 = sbr.rel (0) target = $region65
    $region64: #{forward_network.1} parent=1 // pred_region
      %1539 = dma.done [#allocation10], 128
    $region65: #{forward_network.1} parent=1 // pred_fallthru
      _
    %1540 = vsyncpa [#allocation3], 1
    %1541 = vsyncpa [#allocation6], 1
    %1542 = vsyncpa [#allocation4], 1
    %1543 = vsyncpa [#allocation10], 1

</llo_original>
